<compile_context>
chip_gen: v7x
topology: tpu7x:2x2x1
jax: 0.10.0
libtpu: 0.0.40
codegen_flags: <defaults>
</compile_context>

<pallas_src>
import functools
import math

import jax
import jax.numpy as jnp
from jax.experimental import pallas as pl
from jax.experimental.pallas import tpu as pltpu

LANE = 128


def _round_up(n, m):
    return ((n + m - 1) // m) * m


def vibi_kernel(x_ref, eps_ref, w_exp_ref, b_exp_ref, w_head_ref, b_head_ref,
                pack_ref, xhat_ref, *, dim_z, dimz_pad, y_pad, tight):
    x = x_ref[...]                                                 # (TB, D_in) bf16

    # Fused explainer: one MXU pass -> [mu | pre_softplus | (pack block)], f32 acc.
    dz = jnp.dot(x, w_exp_ref[...],
                 preferred_element_type=jnp.float32) + b_exp_ref[...]
    mu = dz[:, :dimz_pad]                        # lanes >= dimZ are exactly 0
    pre_sp = dz[:, dimz_pad:2 * dimz_pad]        # lanes >= dimZ are exactly 0

    # Reparametrize.  std = exp(0.5*log(softplus(.)^2)) == softplus(.), so no
    # exp()/square is needed.  All elementwise math stays f32 (v5e-safe).
    sp = jax.nn.softplus(pre_sp)
    z = eps_ref[...].astype(jnp.float32) * sp + mu   # padded lanes: 0*log2 + 0 = 0

    # Fused approximator + reconstructor head; bf16 operands, f32 accumulate.
    head = jnp.dot(z.astype(w_head_ref.dtype), w_head_ref[...],
                   preferred_element_type=jnp.float32) + b_head_ref[...]
    y_blk = head[:, :y_pad]                      # y pre-placed by weight layout
    xhat = jax.nn.sigmoid(head[:, y_pad:])       # 128-aligned split

    tb = x.shape[0]
    if tight:
        # Packed slab layout (one 128-lane block): [ z | mu | logvar | y ].
        # mu / pre-softplus copies were pre-placed at lanes [dimZ,2dimZ) and
        # [2dimZ,3dimZ) by the 3rd explainer-weight block; y at [3dimZ,...) by
        # the head weight.  Only the logvar lanes need softplus+log, via a mask.
        pk = dz[:, 2 * dimz_pad:]                # (TB, 128)
        lane = jax.lax.broadcasted_iota(jnp.int32, (tb, dimz_pad), 1)
        lv_lanes = (lane >= 2 * dim_z) & (lane < 3 * dim_z)
        pk = jnp.where(lv_lanes, 2.0 * jnp.log(jax.nn.softplus(pk)), pk)
        pack_ref[...] = z + pk + y_blk
    else:
        # General fallback: lane-aligned concat of the 128-multiple-wide pieces.
        logvar = 2.0 * jnp.log(sp)
        pack_ref[...] = jnp.concatenate([z, mu, logvar, y_blk], axis=1)

    xhat_ref[...] = xhat.astype(xhat_ref.dtype)  # bf16 store: halve x_hat writeback


def init_params(key, d_in, dim_z, d_out_y=10):
    """Deterministic PyTorch-Linear-style init (uniform +-1/sqrt(fan_in)).
    Weights stored as (in, out) so the kernel does x @ W."""
    ks = jax.random.split(key, 6)

    def lin(kw, kb, fan_in, fan_out):
        bound = 1.0 / math.sqrt(fan_in)
        w = jax.random.uniform(kw, (fan_in, fan_out), jnp.float32, -bound, bound)
        b = jax.random.uniform(kb, (fan_out,), jnp.float32, -bound, bound)
        return w, b

    w_exp, b_exp = lin(ks[0], ks[1], d_in, 2 * dim_z)   # explainer
    w_app, b_app = lin(ks[2], ks[3], dim_z, d_out_y)    # approximator
    w_rec, b_rec = lin(ks[4], ks[5], dim_z, d_in)       # reconstructor
    return dict(w_exp=w_exp, b_exp=b_exp, w_app=w_app, b_app=b_app,
                w_rec=w_rec, b_rec=b_rec, dim_z=dim_z, d_out_y=d_out_y)


def pack_vibi_params(params, d_in):
    """Pad / fuse / cast the three Linear layers into kernel operands.

    Call ONCE per model (hoisted weight prep); reuse the result for every
    vibi_forward call so the padding/casting ops never serialize in front of
    the kernel launch.
    """
    dim_z, d_out_y = params["dim_z"], params["d_out_y"]
    dimz_pad = _round_up(dim_z, LANE)
    y_pad = _round_up(d_out_y, LANE)
    tight = (3 * dim_z + d_out_y) <= LANE      # z|mu|logvar|y fit one 128-lane slab

    w_exp, b_exp = params["w_exp"], params["b_exp"]
    w_mu_t, w_sp_t = w_exp[:, :dim_z], w_exp[:, dim_z:]
    b_mu_t, b_sp_t = b_exp[:dim_z], b_exp[dim_z:]

    def place_block(w, b, width, off):
        wp = jnp.zeros((d_in, width), jnp.float32).at[:, off:off + dim_z].set(w)
        bp = jnp.zeros((width,), jnp.float32).at[off:off + dim_z].set(b)
        return wp, bp

    w_mu, b_mu = place_block(w_mu_t, b_mu_t, dimz_pad, 0)
    w_sp, b_sp = place_block(w_sp_t, b_sp_t, dimz_pad, 0)
    w_blocks, b_blocks = [w_mu, w_sp], [b_mu, b_sp]
    if tight:
        # 3rd block: mu at [dimZ,2dimZ), pre-softplus at [2dimZ,3dimZ) — pre-placed
        # for the packed output slab so the kernel needs no lane shuffles.
        w_pk = (jnp.zeros((d_in, LANE), jnp.float32)
                .at[:, dim_z:2 * dim_z].set(w_mu_t)
                .at[:, 2 * dim_z:3 * dim_z].set(w_sp_t))
        b_pk = (jnp.zeros((LANE,), jnp.float32)
                .at[dim_z:2 * dim_z].set(b_mu_t)
                .at[2 * dim_z:3 * dim_z].set(b_sp_t))
        w_blocks.append(w_pk)
        b_blocks.append(b_pk)
    w_exp_k = jnp.concatenate(w_blocks, axis=1).astype(jnp.bfloat16)
    b_exp_k = jnp.concatenate(b_blocks)[None, :]                 # f32

    # Head: [ y block (y placed at 3*dimZ if tight) | reconstructor ].
    y_off = 3 * dim_z if tight else 0
    w_app_p = (jnp.zeros((dimz_pad, y_pad), jnp.float32)
               .at[:dim_z, y_off:y_off + d_out_y].set(params["w_app"]))
    b_app_p = jnp.zeros((y_pad,), jnp.float32).at[y_off:y_off + d_out_y].set(params["b_app"])
    w_rec_p = jnp.zeros((dimz_pad, d_in), jnp.float32).at[:dim_z, :].set(params["w_rec"])
    w_head_k = jnp.concatenate([w_app_p, w_rec_p], axis=1).astype(jnp.bfloat16)
    b_head_k = jnp.concatenate([b_app_p, params["b_rec"]])[None, :]   # f32

    pack_w = LANE if tight else 3 * dimz_pad + y_pad
    return dict(w_exp=w_exp_k, b_exp=b_exp_k, w_head=w_head_k, b_head=b_head_k,
                d_in=d_in, dim_z=dim_z, d_out_y=d_out_y,
                dimz_pad=dimz_pad, y_pad=y_pad, tight=tight, pack_w=pack_w)


def _vmem_limit_bytes():
    cap = 128 * 1024 * 1024                    # v5e/v6e physical VMEM
    try:
        cap = int(pltpu.get_tpu_info().vmem_capacity_bytes)   # v7x: 64 MiB per TC
    except Exception:
        pass
    # >=16 MiB headroom for compiler scratch; never below the 32 MiB scoped default.
    return max(32 * 1024 * 1024, min(cap - 16 * 1024 * 1024, 64 * 1024 * 1024))


def vibi_forward(x, kparams, eps, *, tile_b=None):
    """VIBI.forward(x, mode='forgetting') -> (logits_z, logits_y, x_hat, mu, logvar).

    `kparams` comes from pack_vibi_params(params, d_in) (hoisted weight prep).
    """
    B = x.shape[0]
    d_in = kparams["d_in"]
    assert math.prod(x.shape[1:]) == d_in
    dim_z, d_out_y = kparams["dim_z"], kparams["d_out_y"]
    dimz_pad, y_pad = kparams["dimz_pad"], kparams["y_pad"]
    tight, pack_w = kparams["tight"], kparams["pack_w"]
    exp_cols = kparams["w_exp"].shape[1]
    head_cols = kparams["w_head"].shape[1]

    if tile_b is None:
        # Big tiles (mem-bound roofline on v6e: 256~63%, 512~85%, 1024~86%), but
        # capped so the grid has >=2 steps when B allows, so v7x's 2 TCs both work.
        b8 = max(8, _round_up(B, 8))
        tile_b = min(1024, max(8, _round_up((b8 + 1) // 2, 8)))
    tile_b = max(8, _round_up(tile_b, 8))
    b_pad = _round_up(max(B, tile_b), tile_b)
    grid = (b_pad // tile_b,)

    x_flat = jnp.pad(x.reshape(B, d_in).astype(jnp.bfloat16), ((0, b_pad - B), (0, 0)))
    # eps as bf16; lane-padded with zeros so the padded lanes of z stay exactly 0
    # (required by the weight-placed packing and the zero-padded head K rows).
    eps_k = jnp.pad(eps.astype(jnp.bfloat16),
                    ((0, b_pad - B), (0, dimz_pad - dim_z)))

    def row_spec(width):
        return pl.BlockSpec((tile_b, width), lambda i: (i, 0))

    def resident(shape):
        return pl.BlockSpec(shape, lambda i: (0, 0))     # weights stay VMEM-resident

    out_shapes = (
        jax.ShapeDtypeStruct((b_pad, pack_w), jnp.float32),   # z|mu|logvar|y slab
        jax.ShapeDtypeStruct((b_pad, d_in), jnp.bfloat16),    # x_hat (bf16 writeback)
    )

    flops = 2 * b_pad * d_in * exp_cols + 2 * b_pad * dimz_pad * head_cols
    transcendentals = b_pad * (d_in + 5 * dimz_pad)     # sigmoid + softplus/log paths
    bytes_accessed = (x_flat.size * 2 + eps_k.size * 2
                      + kparams["w_exp"].size * 2 + kparams["w_head"].size * 2
                      + kparams["b_exp"].size * 4 + kparams["b_head"].size * 4
                      + b_pad * pack_w * 4 + b_pad * d_in * 2)

    kernel = functools.partial(vibi_kernel, dim_z=dim_z, dimz_pad=dimz_pad,
                               y_pad=y_pad, tight=tight)

    pack_out, xhat = pl.pallas_call(
        kernel,
        grid=grid,
        in_specs=[
            row_spec(d_in),                      # x tile (bf16)
            row_spec(dimz_pad),                  # eps tile (bf16)
            resident((d_in, exp_cols)),          # fused explainer weight (bf16)
            resident((1, exp_cols)),             # explainer bias (f32)
            resident((dimz_pad, head_cols)),     # fused approx+recon weight (bf16)
            resident((1, head_cols)),            # fused head bias (f32)
        ],
        out_specs=(
            row_spec(pack_w),                    # packed z|mu|logvar|y (f32)
            row_spec(d_in),                      # x_hat (bf16)
        ),
        out_shape=out_shapes,
        compiler_params=pltpu.CompilerParams(
            dimension_semantics=("parallel",),   # megacore / v7x 2-TC batch split
            vmem_limit_bytes=_vmem_limit_bytes(),
        ),
        cost_estimate=pl.CostEstimate(
            flops=int(flops),
            transcendentals=int(transcendentals),
            bytes_accessed=int(bytes_accessed),
        ),
    )(x_flat, eps_k, kparams["w_exp"], kparams["b_exp"],
      kparams["w_head"], kparams["b_head"])

    if tight:
        offs = (0, dim_z, 2 * dim_z, 3 * dim_z)
    else:
        offs = (0, dimz_pad, 2 * dimz_pad, 3 * dimz_pad)
    logits_z = pack_out[:B, offs[0]:offs[0] + dim_z]
    mu = pack_out[:B, offs[1]:offs[1] + dim_z]
    logvar = pack_out[:B, offs[2]:offs[2] + dim_z]
    logits_y = pack_out[:B, offs[3]:offs[3] + d_out_y].reshape(B, d_out_y)
    x_hat = xhat[:B].astype(jnp.float32)         # upcast for downstream f32 use
    return logits_z, logits_y, x_hat, mu, logvar


def _vibi_reference(x, params, eps):
    """Pure-JAX reference of the PyTorch forward, emulating the kernel's bf16
    matmul operands (f32 accumulation), so the check can be tight (1e-2)."""
    B = x.shape[0]
    d_in = math.prod(x.shape[1:])
    dim_z = params["dim_z"]

    def r(v):  # bf16 operand rounding; bf16 x bf16 products are exact in f32
        return v.astype(jnp.bfloat16).astype(jnp.float32)

    xf = r(x.reshape(B, d_in))
    dz = xf @ r(params["w_exp"]) + params["b_exp"]
    mu = dz[:, :dim_z]
    logvar = jnp.log(jax.nn.softplus(dz[:, dim_z:]) ** 2)
    z = r(eps) * jnp.exp(0.5 * logvar) + mu
    zb = r(z)
    y = (zb @ r(params["w_app"]) + params["b_app"]).reshape(B, -1)
    x_hat = jax.nn.sigmoid(zb @ r(params["w_rec"]) + params["b_rec"])
    return z, y, x_hat, mu, logvar


if __name__ == "__main__":
    B, C, H, W = 2, 4, 16, 16
    DIM_Z = 32
    D_IN = C * H * W

    key = jax.random.PRNGKey(0)
    k_x, k_p, k_eps = jax.random.split(key, 3)

    x = jax.random.normal(k_x, (B, C, H, W), jnp.float32)     # NCHW input
    params = init_params(k_p, D_IN, DIM_Z)
    eps = jax.random.normal(k_eps, (B, DIM_Z), jnp.float32)   # reparam noise

    kparams = pack_vibi_params(params, D_IN)   # hoisted weight prep (once per model)
    outs = vibi_forward(x, kparams, eps)
    jax.block_until_ready(outs)
    logits_z, logits_y, x_hat, mu, logvar = outs

    assert logits_z.shape == (B, DIM_Z)
    assert logits_y.shape == (B, 10)
    assert x_hat.shape == (B, D_IN)
    assert mu.shape == (B, DIM_Z)
    assert logvar.shape == (B, DIM_Z)
    for o in outs:
        assert bool(jnp.all(jnp.isfinite(o)))

    # Check vs a bf16-operand reference (kernel matmuls are bf16 with f32 acc).
    refs = _vibi_reference(x, params, eps)
    names = ("z", "y", "x_hat", "mu", "logvar")
    for name, got, ref in zip(names, outs, refs):
        ok = bool(jnp.allclose(got, ref, rtol=1e-2, atol=1e-2))
        assert ok, (name, float(jnp.max(jnp.abs(got - ref))))

    print("KERNEL_OK")
</pallas_src>

<mosaic_0001>
module attributes {stable_mosaic.version = 11 : i64} {
  func.func @vibi_kernel(%arg0: i32, %arg1: memref<8x1024xbf16, #tpu.memory_space<vmem>>, %arg2: memref<8x128xbf16, #tpu.memory_space<vmem>>, %arg3: memref<1024x384xbf16, #tpu.memory_space<vmem>>, %arg4: memref<1x384xf32, #tpu.memory_space<vmem>>, %arg5: memref<128x1152xbf16, #tpu.memory_space<vmem>>, %arg6: memref<1x1152xf32, #tpu.memory_space<vmem>>, %arg7: memref<8x128xf32, #tpu.memory_space<vmem>>, %arg8: memref<8x1024xbf16, #tpu.memory_space<vmem>>) attributes {dimension_semantics = [#tpu.dimension_semantics<parallel>], iteration_bounds = array<i64: 1>, scalar_prefetch = 0 : i64, scratch_operands = 0 : i64, tpu.core_type = #tpu.core_type<tc>, window_params = [{transform_indices = @transform_0, window_bounds = array<i64: 8, 1024>}, {transform_indices = @transform_1, window_bounds = array<i64: 8, 128>}, {pipeline_mode = #tpu.pipeline_mode<synchronous>, transform_indices = @transform_2, window_bounds = array<i64: 1024, 384>}, {pipeline_mode = #tpu.pipeline_mode<synchronous>, transform_indices = @transform_3, window_bounds = array<i64: 1, 384>}, {pipeline_mode = #tpu.pipeline_mode<synchronous>, transform_indices = @transform_4, window_bounds = array<i64: 128, 1152>}, {pipeline_mode = #tpu.pipeline_mode<synchronous>, transform_indices = @transform_5, window_bounds = array<i64: 1, 1152>}, {transform_indices = @transform_6, window_bounds = array<i64: 8, 128>}, {transform_indices = @transform_7, window_bounds = array<i64: 8, 1024>}]} {
    %c0 = arith.constant 0 : index
    %c0_0 = arith.constant 0 : index
    %0 = vector.load %arg1[%c0, %c0_0] : memref<8x1024xbf16, #tpu.memory_space<vmem>>, vector<8x1024xbf16>
    %c0_1 = arith.constant 0 : index
    %c0_2 = arith.constant 0 : index
    %1 = vector.load %arg3[%c0_1, %c0_2] : memref<1024x384xbf16, #tpu.memory_space<vmem>>, vector<1024x384xbf16>
    %cst = arith.constant dense<0.000000e+00> : vector<8x384xf32>
    %2 = tpu.matmul %0, %1, %cst {dimension_numbers = #tpu.dot_dimension_numbers<[1], [0], [0], [1], [0, 0, 1, 1], [], []>} : vector<8x1024xbf16>, vector<1024x384xbf16>, vector<8x384xf32> -> vector<8x384xf32>
    %c0_3 = arith.constant 0 : index
    %c0_4 = arith.constant 0 : index
    %3 = vector.load %arg4[%c0_3, %c0_4] : memref<1x384xf32, #tpu.memory_space<vmem>>, vector<1x384xf32>
    %4 = vector.broadcast %3 : vector<1x384xf32> to vector<8x384xf32>
    %5 = arith.addf %2, %4 : vector<8x384xf32>
    %6 = vector.extract_strided_slice %5 {offsets = [0, 0], sizes = [8, 128], strides = [1, 1]} : vector<8x384xf32> to vector<8x128xf32>
    %7 = vector.extract_strided_slice %5 {offsets = [0, 128], sizes = [8, 128], strides = [1, 1]} : vector<8x384xf32> to vector<8x128xf32>
    %cst_5 = arith.constant 0.000000e+00 : f32
    %8 = vector.broadcast %cst_5 : f32 to vector<8x128xf32>
    %9 = arith.maximumf %7, %8 : vector<8x128xf32>
    %10 = vector.broadcast %cst_5 : f32 to vector<8x128xf32>
    %11 = arith.subf %7, %10 : vector<8x128xf32>
    %12 = arith.cmpf one, %11, %11 : vector<8x128xf32>
    %13 = vector.broadcast %cst_5 : f32 to vector<8x128xf32>
    %14 = arith.addf %7, %13 : vector<8x128xf32>
    %15 = math.absf %11 : vector<8x128xf32>
    %cst_6 = arith.constant 0.000000e+00 : f32
    %16 = vector.broadcast %cst_6 : f32 to vector<8x128xf32>
    %17 = arith.subf %16, %15 : vector<8x128xf32>
    %18 = math.exp %17 : vector<8x128xf32>
    %19 = math.log1p %18 : vector<8x128xf32>
    %20 = arith.addf %9, %19 : vector<8x128xf32>
    %21 = arith.select %12, %14, %20 : vector<8x128xi1>, vector<8x128xf32>
    %c0_7 = arith.constant 0 : index
    %c0_8 = arith.constant 0 : index
    %22 = vector.load %arg2[%c0_7, %c0_8] : memref<8x128xbf16, #tpu.memory_space<vmem>>, vector<8x128xbf16>
    %23 = arith.extf %22 : vector<8x128xbf16> to vector<8x128xf32>
    %24 = arith.mulf %23, %21 : vector<8x128xf32>
    %25 = arith.addf %24, %6 : vector<8x128xf32>
    %26 = arith.truncf %25 : vector<8x128xf32> to vector<8x128xbf16>
    %c0_9 = arith.constant 0 : index
    %c0_10 = arith.constant 0 : index
    %27 = vector.load %arg5[%c0_9, %c0_10] : memref<128x1152xbf16, #tpu.memory_space<vmem>>, vector<128x1152xbf16>
    %cst_11 = arith.constant dense<0.000000e+00> : vector<8x1152xf32>
    %28 = tpu.matmul %26, %27, %cst_11 {dimension_numbers = #tpu.dot_dimension_numbers<[1], [0], [0], [1], [0, 0, 1, 1], [], []>} : vector<8x128xbf16>, vector<128x1152xbf16>, vector<8x1152xf32> -> vector<8x1152xf32>
    %c0_12 = arith.constant 0 : index
    %c0_13 = arith.constant 0 : index
    %29 = vector.load %arg6[%c0_12, %c0_13] : memref<1x1152xf32, #tpu.memory_space<vmem>>, vector<1x1152xf32>
    %30 = vector.broadcast %29 : vector<1x1152xf32> to vector<8x1152xf32>
    %31 = arith.addf %28, %30 : vector<8x1152xf32>
    %32 = vector.extract_strided_slice %31 {offsets = [0, 0], sizes = [8, 128], strides = [1, 1]} : vector<8x1152xf32> to vector<8x128xf32>
    %33 = vector.extract_strided_slice %31 {offsets = [0, 128], sizes = [8, 1024], strides = [1, 1]} : vector<8x1152xf32> to vector<8x1024xf32>
    %34 = arith.negf %33 : vector<8x1024xf32>
    %35 = math.exp %34 : vector<8x1024xf32>
    %cst_14 = arith.constant 1.000000e+00 : f32
    %36 = vector.broadcast %cst_14 : f32 to vector<8x1024xf32>
    %37 = arith.addf %36, %35 : vector<8x1024xf32>
    %38 = arith.divf %36, %37 : vector<8x1024xf32>
    %39 = vector.extract_strided_slice %5 {offsets = [0, 256], sizes = [8, 128], strides = [1, 1]} : vector<8x384xf32> to vector<8x128xf32>
    %40 = tpu.iota {dimensions = array<i32: 1>} : vector<8x128xi32>
    %c64_i32 = arith.constant 64 : i32
    %41 = vector.broadcast %c64_i32 : i32 to vector<8x128xi32>
    %42 = arith.cmpi sge, %40, %41 : vector<8x128xi32>
    %c96_i32 = arith.constant 96 : i32
    %43 = vector.broadcast %c96_i32 : i32 to vector<8x128xi32>
    %44 = arith.cmpi slt, %40, %43 : vector<8x128xi32>
    %45 = arith.andi %42, %44 : vector<8x128xi1>
    %cst_15 = arith.constant 0.000000e+00 : f32
    %46 = vector.broadcast %cst_15 : f32 to vector<8x128xf32>
    %47 = arith.maximumf %39, %46 : vector<8x128xf32>
    %48 = vector.broadcast %cst_15 : f32 to vector<8x128xf32>
    %49 = arith.subf %39, %48 : vector<8x128xf32>
    %50 = arith.cmpf one, %49, %49 : vector<8x128xf32>
    %51 = vector.broadcast %cst_15 : f32 to vector<8x128xf32>
    %52 = arith.addf %39, %51 : vector<8x128xf32>
    %53 = math.absf %49 : vector<8x128xf32>
    %cst_16 = arith.constant 0.000000e+00 : f32
    %54 = vector.broadcast %cst_16 : f32 to vector<8x128xf32>
    %55 = arith.subf %54, %53 : vector<8x128xf32>
    %56 = math.exp %55 : vector<8x128xf32>
    %57 = math.log1p %56 : vector<8x128xf32>
    %58 = arith.addf %47, %57 : vector<8x128xf32>
    %59 = arith.select %50, %52, %58 : vector<8x128xi1>, vector<8x128xf32>
    %60 = math.log %59 : vector<8x128xf32>
    %cst_17 = arith.constant 2.000000e+00 : f32
    %61 = vector.broadcast %cst_17 : f32 to vector<8x128xf32>
    %62 = arith.mulf %61, %60 : vector<8x128xf32>
    %63 = arith.select %45, %62, %39 : vector<8x128xi1>, vector<8x128xf32>
    %64 = arith.addf %25, %63 : vector<8x128xf32>
    %65 = arith.addf %64, %32 : vector<8x128xf32>
    %c0_18 = arith.constant 0 : index
    %c0_19 = arith.constant 0 : index
    %66 = vector.load %arg7[%c0_18, %c0_19] : memref<8x128xf32, #tpu.memory_space<vmem>>, vector<8x128xf32>
    tpu.vector_store %arg7[%c0_18, %c0_19], %65 {strides = array<i32>} : memref<8x128xf32, #tpu.memory_space<vmem>>, vector<8x128xf32>,
    %67 = arith.truncf %38 : vector<8x1024xf32> to vector<8x1024xbf16>
    %c0_20 = arith.constant 0 : index
    %c0_21 = arith.constant 0 : index
    %68 = vector.load %arg8[%c0_20, %c0_21] : memref<8x1024xbf16, #tpu.memory_space<vmem>>, vector<8x1024xbf16>
    tpu.vector_store %arg8[%c0_20, %c0_21], %67 {strides = array<i32>} : memref<8x1024xbf16, #tpu.memory_space<vmem>>, vector<8x1024xbf16>,
    return
  }
  func.func @transform_0(%arg0: i32) -> (i32, i32) {
    %c0_i32 = arith.constant 0 : i32
    %c0_i32_0 = arith.constant 0 : i32
    return %arg0, %c0_i32 : i32, i32
  }
  func.func @transform_1(%arg0: i32) -> (i32, i32) {
    %c0_i32 = arith.constant 0 : i32
    %c0_i32_0 = arith.constant 0 : i32
    return %arg0, %c0_i32 : i32, i32
  }
  func.func @transform_2(%arg0: i32) -> (i32, i32) {
    %c0_i32 = arith.constant 0 : i32
    %c0_i32_0 = arith.constant 0 : i32
    %c0_i32_1 = arith.constant 0 : i32
    return %c0_i32, %c0_i32_0 : i32, i32
  }
  func.func @transform_3(%arg0: i32) -> (i32, i32) {
    %c0_i32 = arith.constant 0 : i32
    %c0_i32_0 = arith.constant 0 : i32
    %c0_i32_1 = arith.constant 0 : i32
    return %c0_i32, %c0_i32_0 : i32, i32
  }
  func.func @transform_4(%arg0: i32) -> (i32, i32) {
    %c0_i32 = arith.constant 0 : i32
    %c0_i32_0 = arith.constant 0 : i32
    %c0_i32_1 = arith.constant 0 : i32
    return %c0_i32, %c0_i32_0 : i32, i32
  }
  func.func @transform_5(%arg0: i32) -> (i32, i32) {
    %c0_i32 = arith.constant 0 : i32
    %c0_i32_0 = arith.constant 0 : i32
    %c0_i32_1 = arith.constant 0 : i32
    return %c0_i32, %c0_i32_0 : i32, i32
  }
  func.func @transform_6(%arg0: i32) -> (i32, i32) {
    %c0_i32 = arith.constant 0 : i32
    %c0_i32_0 = arith.constant 0 : i32
    return %arg0, %c0_i32 : i32, i32
  }
  func.func @transform_7(%arg0: i32) -> (i32, i32) {
    %c0_i32 = arith.constant 0 : i32
    %c0_i32_0 = arith.constant 0 : i32
    return %arg0, %c0_i32 : i32, i32
  }
}

</mosaic_0001>

<llo_original>
// kernel: tpu_custom_call.1
$region0: #{tpu_custom_call.1}
  #allocation0 [shape = 'u32[]', space=smem, size = 0x4, offset = 0x4, fixed_abs, tag = 'smem constant byte address 0x4 - core index']
  #allocation1 [shape = 'u32[144,128]{1,0:T(1,128)}', space=vmem, size = 0x12000, scoped, tag = 'internal scratch']
  %s0 = inlined_call_operand.hbm [shape: bf16[8,1024], index: 0, kind: input, shape index: {}]
  %s1 = inlined_call_operand.hbm [shape: bf16[8,128], index: 1, kind: input, shape index: {}]
  %s2 = inlined_call_operand.hbm [shape: bf16[1024,384], index: 2, kind: input, shape index: {}]
  %s3 = inlined_call_operand.hbm [shape: f32[1,384], index: 3, kind: input, shape index: {}]
  %s4 = inlined_call_operand.hbm [shape: bf16[128,1152], index: 4, kind: input, shape index: {}]
  %s5 = inlined_call_operand.hbm [shape: f32[1,1152], index: 5, kind: input, shape index: {}]
  %s6 = inlined_call_operand.hbm [shape: f32[8,128], index: 6, kind: output, shape index: {0}]
  %s7 = inlined_call_operand.hbm [shape: bf16[8,1024], index: 7, kind: output, shape index: {1}]
  %8 = xla_tuple %s6, %s7
  %s9 = sld [smem:[#allocation0]]
  $region66: #{tpu_custom_call.1} parent=0
    _
  %s11 = ssub.s32 1, %s9
  %s12 = scalar_select 0, %s11, %s9
  $region1: #{tpu_custom_call.1} parent=0
    #allocation2 [shape = 'u8[16384]{0}', space=vmem, size = 0x4000, scoped, tag = 'input window, operand 0, single buffered']
    #allocation3 [shape = 's32[1]{0}', space=sflag, size = 0x4, scoped, tag = 'scoped memory for tpu_custom_call.1']
    #allocation4 [shape = 's32[1]{0}', space=sflag, size = 0x4, scoped, tag = 'scoped memory for tpu_custom_call.1']
    #allocation5 [shape = 'u8[2048]{0}', space=vmem, size = 0x800, scoped, tag = 'input window, operand 1, single buffered']
    #allocation6 [shape = 's32[1]{0}', space=sflag, size = 0x4, scoped, tag = 'scoped memory for tpu_custom_call.1']
    #allocation7 [shape = 'u8[786432]{0}', space=vmem, size = 0xc0000, scoped, tag = 'input window, operand 2, single buffered']
    #allocation8 [shape = 'u8[1536]{0}', space=vmem, size = 0x800, scoped, tag = 'input window, operand 3, single buffered']
    #allocation9 [shape = 's32[1]{0}', space=sflag, size = 0x4, scoped, tag = 'scoped memory for tpu_custom_call.1']
    #allocation10 [shape = 'u8[294912]{0}', space=vmem, size = 0x48000, scoped, tag = 'input window, operand 4, single buffered']
    #allocation11 [shape = 'u8[4608]{0}', space=vmem, size = 0x1400, scoped, tag = 'input window, operand 5, single buffered']
    #allocation12 [shape = 's32[1]{0}', space=sflag, size = 0x4, scoped, tag = 'scoped memory for tpu_custom_call.1']
    #allocation13 [shape = 'u8[4096]{0}', space=vmem, size = 0x1000, scoped, tag = 'output window, operand 0, single buffered']
    #allocation14 [shape = 'u8[16384]{0}', space=vmem, size = 0x4000, scoped, tag = 'output window, operand 1, single buffered']
    #allocation15 [shape = 's32[1]{0}', space=sflag, size = 0x4, scoped, tag = 'scoped memory for tpu_custom_call.1']
    %13 = vsyncpa [#allocation3], 0
    %14 = vsyncpa [#allocation6], 0
    %15 = vsyncpa [#allocation9], 0
    %16 = vsyncpa [#allocation12], 0
    %17 = vsyncpa [#allocation4], 0
    %18 = vsyncpa [#allocation15], 0
    // Predicated region
    $region2: #{tpu_custom_call.1} parent=1 // pred_check
      _
    $region3: #{tpu_custom_call.1} parent=1 // pred_check_branch
      %20 = sbr.rel (0) target = $region5
    $region4: #{tpu_custom_call.1} parent=1 // pred_region
      %s22 = ssub.s32 512, 512
      %23 = vsyncadd [#allocation3], %s22
      %s25 = sshll.u32 [#allocation2], 4
      %s26 = int_to_ptr.vmem [resolvable:$true] %s25
      %28 = dma.hbm_to_vmem [thread:$0]  %s0, 512, %s26, [#allocation3]
    $region5: #{tpu_custom_call.1} parent=1 // pred_fallthru
      _
    // Predicated region
    $region6: #{tpu_custom_call.1} parent=1 // pred_check
      _
    $region7: #{tpu_custom_call.1} parent=1 // pred_check_branch
      %30 = sbr.rel (0) target = $region9
    $region8: #{tpu_custom_call.1} parent=1 // pred_region
      %s32 = ssub.s32 64, 64
      %33 = vsyncadd [#allocation6], %s32
      %s35 = sshll.u32 [#allocation5], 4
      %s36 = int_to_ptr.vmem [resolvable:$true] %s35
      %38 = dma.hbm_to_vmem [thread:$0]  %s1, 64, %s36, [#allocation6]
    $region9: #{tpu_custom_call.1} parent=1 // pred_fallthru
      _
    // Predicated region
    $region10: #{tpu_custom_call.1} parent=1 // pred_check
      _
    $region11: #{tpu_custom_call.1} parent=1 // pred_check_branch
      %40 = sbr.rel (0) target = $region13
    $region12: #{tpu_custom_call.1} parent=1 // pred_region
      %s42 = ssub.s32 24576, 24576
      %43 = vsyncadd [#allocation6], %s42
      %s44 = sshll.u32 [#allocation7], 4
      %s45 = int_to_ptr.vmem [resolvable:$true] %s44
      %50 = dma.hbm_to_vmem [thread:$0]  %s2, 24576, %s45, [#allocation6], 192, 192, 12
    $region13: #{tpu_custom_call.1} parent=1 // pred_fallthru
      _
    // Predicated region
    $region14: #{tpu_custom_call.1} parent=1 // pred_check
      _
    $region15: #{tpu_custom_call.1} parent=1 // pred_check_branch
      %52 = sbr.rel (0) target = $region17
    $region16: #{tpu_custom_call.1} parent=1 // pred_region
      %s54 = ssub.s32 48, 48
      %55 = vsyncadd [#allocation9], %s54
      %s57 = sshll.u32 [#allocation8], 4
      %s58 = int_to_ptr.vmem [resolvable:$true] %s57
      %60 = dma.hbm_to_vmem [thread:$0]  %s3, 48, %s58, [#allocation9]
    $region17: #{tpu_custom_call.1} parent=1 // pred_fallthru
      _
    // Predicated region
    $region18: #{tpu_custom_call.1} parent=1 // pred_check
      _
    $region19: #{tpu_custom_call.1} parent=1 // pred_check_branch
      %62 = sbr.rel (0) target = $region21
    $region20: #{tpu_custom_call.1} parent=1 // pred_region
      %s64 = ssub.s32 9216, 9216
      %65 = vsyncadd [#allocation9], %s64
      %s66 = sshll.u32 [#allocation10], 4
      %s67 = int_to_ptr.vmem [resolvable:$true] %s66
      %72 = dma.hbm_to_vmem [thread:$0]  %s4, 9216, %s67, [#allocation9], 576, 576, 36
    $region21: #{tpu_custom_call.1} parent=1 // pred_fallthru
      _
    // Predicated region
    $region22: #{tpu_custom_call.1} parent=1 // pred_check
      _
    $region23: #{tpu_custom_call.1} parent=1 // pred_check_branch
      %74 = sbr.rel (0) target = $region25
    $region24: #{tpu_custom_call.1} parent=1 // pred_region
      %s76 = ssub.s32 144, 144
      %77 = vsyncadd [#allocation12], %s76
      %s79 = sshll.u32 [#allocation11], 4
      %s80 = int_to_ptr.vmem [resolvable:$true] %s79
      %82 = dma.hbm_to_vmem [thread:$0]  %s5, 144, %s80, [#allocation12]
    $region25: #{tpu_custom_call.1} parent=1 // pred_fallthru
      _
    // Predicated region
    $region26: #{tpu_custom_call.1} parent=1 // pred_check
      _
    $region27: #{tpu_custom_call.1} parent=1 // pred_check_branch
      %84 = sbr.rel (0) target = $region29
    $region28: #{tpu_custom_call.1} parent=1 // pred_region
      %85 = dma.done [#allocation3], 512
    $region29: #{tpu_custom_call.1} parent=1 // pred_fallthru
      _
    // Predicated region
    $region30: #{tpu_custom_call.1} parent=1 // pred_check
      _
    $region31: #{tpu_custom_call.1} parent=1 // pred_check_branch
      %87 = sbr.rel (0) target = $region33
    $region32: #{tpu_custom_call.1} parent=1 // pred_region
      %88 = dma.done [#allocation6], 64
    $region33: #{tpu_custom_call.1} parent=1 // pred_fallthru
      _
    // Predicated region
    $region34: #{tpu_custom_call.1} parent=1 // pred_check
      _
    $region35: #{tpu_custom_call.1} parent=1 // pred_check_branch
      %90 = sbr.rel (0) target = $region37
    $region36: #{tpu_custom_call.1} parent=1 // pred_region
      %91 = dma.done [#allocation6], 24576
    $region37: #{tpu_custom_call.1} parent=1 // pred_fallthru
      _
    // Predicated region
    $region38: #{tpu_custom_call.1} parent=1 // pred_check
      _
    $region39: #{tpu_custom_call.1} parent=1 // pred_check_branch
      %93 = sbr.rel (0) target = $region41
    $region40: #{tpu_custom_call.1} parent=1 // pred_region
      %94 = dma.done [#allocation9], 48
    $region41: #{tpu_custom_call.1} parent=1 // pred_fallthru
      _
    // Predicated region
    $region42: #{tpu_custom_call.1} parent=1 // pred_check
      _
    $region43: #{tpu_custom_call.1} parent=1 // pred_check_branch
      %96 = sbr.rel (0) target = $region45
    $region44: #{tpu_custom_call.1} parent=1 // pred_region
      %97 = dma.done [#allocation9], 9216
    $region45: #{tpu_custom_call.1} parent=1 // pred_fallthru
      _
    // Predicated region
    $region46: #{tpu_custom_call.1} parent=1 // pred_check
      _
    $region47: #{tpu_custom_call.1} parent=1 // pred_check_branch
      %99 = sbr.rel (0) target = $region49
    $region48: #{tpu_custom_call.1} parent=1 // pred_region
      %100 = dma.done [#allocation12], 144
    $region49: #{tpu_custom_call.1} parent=1 // pred_fallthru
      _
    %v102 = vld [vmem:[#allocation2] sm:$0xff]
    %v103 = vld [vmem:[#allocation2 + $0x8] sm:$0xff]
    %v104 = vld [vmem:[#allocation2 + $0x10] sm:$0xff]
    %v105 = vld [vmem:[#allocation2 + $0x18] sm:$0xff]
    %v106 = vld [vmem:[#allocation7] sm:$0xff]
    %v107 = vld [vmem:[#allocation7 + $0x8] sm:$0xf]
    %v108 = vld [vmem:[#allocation7 + $0xc] sm:$0xff]
    %v109 = vld [vmem:[#allocation7 + $0x14] sm:$0xf]
    %v110 = vld [vmem:[#allocation7 + $0x18] sm:$0xff]
    %v111 = vld [vmem:[#allocation7 + $0x20] sm:$0xf]
    %v112 = vld [vmem:[#allocation7 + $0x24] sm:$0xff]
    %v113 = vld [vmem:[#allocation7 + $0x2c] sm:$0xf]
    %v114 = vld [vmem:[#allocation7 + $0x30] sm:$0xff]
    %v115 = vld [vmem:[#allocation7 + $0x38] sm:$0xf]
    %v116 = vld [vmem:[#allocation7 + $0x3c] sm:$0xff]
    %v117 = vld [vmem:[#allocation7 + $0x44] sm:$0xf]
    %v118 = vld [vmem:[#allocation7 + $0x48] sm:$0xff]
    %v119 = vld [vmem:[#allocation7 + $0x50] sm:$0xf]
    %v120 = vld [vmem:[#allocation7 + $0x54] sm:$0xff]
    %v121 = vld [vmem:[#allocation7 + $0x5c] sm:$0xf]
    %v122 = vld [vmem:[#allocation7 + $0x60] sm:$0xff]
    %v123 = vld [vmem:[#allocation7 + $0x68] sm:$0xf]
    %v124 = vld [vmem:[#allocation7 + $0x6c] sm:$0xff]
    %v125 = vld [vmem:[#allocation7 + $0x74] sm:$0xf]
    %v126 = vld [vmem:[#allocation7 + $0x78] sm:$0xff]
    %v127 = vld [vmem:[#allocation7 + $0x80] sm:$0xf]
    %v128 = vld [vmem:[#allocation7 + $0x84] sm:$0xff]
    %v129 = vld [vmem:[#allocation7 + $0x8c] sm:$0xf]
    %v130 = vld [vmem:[#allocation7 + $0x90] sm:$0xff]
    %v131 = vld [vmem:[#allocation7 + $0x98] sm:$0xf]
    %v132 = vld [vmem:[#allocation7 + $0x9c] sm:$0xff]
    %v133 = vld [vmem:[#allocation7 + $0xa4] sm:$0xf]
    %v134 = vld [vmem:[#allocation7 + $0xa8] sm:$0xff]
    %v135 = vld [vmem:[#allocation7 + $0xb0] sm:$0xf]
    %v136 = vld [vmem:[#allocation7 + $0xb4] sm:$0xff]
    %v137 = vld [vmem:[#allocation7 + $0xbc] sm:$0xf]
    %v138 = vld [vmem:[#allocation7 + $0xc0] sm:$0xff]
    %v139 = vld [vmem:[#allocation7 + $0xc8] sm:$0xf]
    %v140 = vld [vmem:[#allocation7 + $0xcc] sm:$0xff]
    %v141 = vld [vmem:[#allocation7 + $0xd4] sm:$0xf]
    %v142 = vld [vmem:[#allocation7 + $0xd8] sm:$0xff]
    %v143 = vld [vmem:[#allocation7 + $0xe0] sm:$0xf]
    %v144 = vld [vmem:[#allocation7 + $0xe4] sm:$0xff]
    %v145 = vld [vmem:[#allocation7 + $0xec] sm:$0xf]
    %v146 = vld [vmem:[#allocation7 + $0xf0] sm:$0xff]
    %v147 = vld [vmem:[#allocation7 + $0xf8] sm:$0xf]
    %v148 = vld [vmem:[#allocation7 + $0xfc] sm:$0xff]
    %v149 = vld [vmem:[#allocation7 + $0x104] sm:$0xf]
    %v150 = vld [vmem:[#allocation7 + $0x108] sm:$0xff]
    %v151 = vld [vmem:[#allocation7 + $0x110] sm:$0xf]
    %v152 = vld [vmem:[#allocation7 + $0x114] sm:$0xff]
    %v153 = vld [vmem:[#allocation7 + $0x11c] sm:$0xf]
    %v154 = vld [vmem:[#allocation7 + $0x120] sm:$0xff]
    %v155 = vld [vmem:[#allocation7 + $0x128] sm:$0xf]
    %v156 = vld [vmem:[#allocation7 + $0x12c] sm:$0xff]
    %v157 = vld [vmem:[#allocation7 + $0x134] sm:$0xf]
    %v158 = vld [vmem:[#allocation7 + $0x138] sm:$0xff]
    %v159 = vld [vmem:[#allocation7 + $0x140] sm:$0xf]
    %v160 = vld [vmem:[#allocation7 + $0x144] sm:$0xff]
    %v161 = vld [vmem:[#allocation7 + $0x14c] sm:$0xf]
    %v162 = vld [vmem:[#allocation7 + $0x150] sm:$0xff]
    %v163 = vld [vmem:[#allocation7 + $0x158] sm:$0xf]
    %v164 = vld [vmem:[#allocation7 + $0x15c] sm:$0xff]
    %v165 = vld [vmem:[#allocation7 + $0x164] sm:$0xf]
    %v166 = vld [vmem:[#allocation7 + $0x168] sm:$0xff]
    %v167 = vld [vmem:[#allocation7 + $0x170] sm:$0xf]
    %v168 = vld [vmem:[#allocation7 + $0x174] sm:$0xff]
    %v169 = vld [vmem:[#allocation7 + $0x17c] sm:$0xf]
    %v170 = vld [vmem:[#allocation7 + $0x180] sm:$0xff]
    %v171 = vld [vmem:[#allocation7 + $0x188] sm:$0xf]
    %v172 = vld [vmem:[#allocation7 + $0x18c] sm:$0xff]
    %v173 = vld [vmem:[#allocation7 + $0x194] sm:$0xf]
    %v174 = vld [vmem:[#allocation7 + $0x198] sm:$0xff]
    %v175 = vld [vmem:[#allocation7 + $0x1a0] sm:$0xf]
    %v176 = vld [vmem:[#allocation7 + $0x1a4] sm:$0xff]
    %v177 = vld [vmem:[#allocation7 + $0x1ac] sm:$0xf]
    %v178 = vld [vmem:[#allocation7 + $0x1b0] sm:$0xff]
    %v179 = vld [vmem:[#allocation7 + $0x1b8] sm:$0xf]
    %v180 = vld [vmem:[#allocation7 + $0x1bc] sm:$0xff]
    %v181 = vld [vmem:[#allocation7 + $0x1c4] sm:$0xf]
    %v182 = vld [vmem:[#allocation7 + $0x1c8] sm:$0xff]
    %v183 = vld [vmem:[#allocation7 + $0x1d0] sm:$0xf]
    %v184 = vld [vmem:[#allocation7 + $0x1d4] sm:$0xff]
    %v185 = vld [vmem:[#allocation7 + $0x1dc] sm:$0xf]
    %v186 = vld [vmem:[#allocation7 + $0x1e0] sm:$0xff]
    %v187 = vld [vmem:[#allocation7 + $0x1e8] sm:$0xf]
    %v188 = vld [vmem:[#allocation7 + $0x1ec] sm:$0xff]
    %v189 = vld [vmem:[#allocation7 + $0x1f4] sm:$0xf]
    %v190 = vld [vmem:[#allocation7 + $0x1f8] sm:$0xff]
    %v191 = vld [vmem:[#allocation7 + $0x200] sm:$0xf]
    %v192 = vld [vmem:[#allocation7 + $0x204] sm:$0xff]
    %v193 = vld [vmem:[#allocation7 + $0x20c] sm:$0xf]
    %v194 = vld [vmem:[#allocation7 + $0x210] sm:$0xff]
    %v195 = vld [vmem:[#allocation7 + $0x218] sm:$0xf]
    %v196 = vld [vmem:[#allocation7 + $0x21c] sm:$0xff]
    %v197 = vld [vmem:[#allocation7 + $0x224] sm:$0xf]
    %v198 = vld [vmem:[#allocation7 + $0x228] sm:$0xff]
    %v199 = vld [vmem:[#allocation7 + $0x230] sm:$0xf]
    %v200 = vld [vmem:[#allocation7 + $0x234] sm:$0xff]
    %v201 = vld [vmem:[#allocation7 + $0x23c] sm:$0xf]
    %v202 = vld [vmem:[#allocation7 + $0x240] sm:$0xff]
    %v203 = vld [vmem:[#allocation7 + $0x248] sm:$0xf]
    %v204 = vld [vmem:[#allocation7 + $0x24c] sm:$0xff]
    %v205 = vld [vmem:[#allocation7 + $0x254] sm:$0xf]
    %v206 = vld [vmem:[#allocation7 + $0x258] sm:$0xff]
    %v207 = vld [vmem:[#allocation7 + $0x260] sm:$0xf]
    %v208 = vld [vmem:[#allocation7 + $0x264] sm:$0xff]
    %v209 = vld [vmem:[#allocation7 + $0x26c] sm:$0xf]
    %v210 = vld [vmem:[#allocation7 + $0x270] sm:$0xff]
    %v211 = vld [vmem:[#allocation7 + $0x278] sm:$0xf]
    %v212 = vld [vmem:[#allocation7 + $0x27c] sm:$0xff]
    %v213 = vld [vmem:[#allocation7 + $0x284] sm:$0xf]
    %v214 = vld [vmem:[#allocation7 + $0x288] sm:$0xff]
    %v215 = vld [vmem:[#allocation7 + $0x290] sm:$0xf]
    %v216 = vld [vmem:[#allocation7 + $0x294] sm:$0xff]
    %v217 = vld [vmem:[#allocation7 + $0x29c] sm:$0xf]
    %v218 = vld [vmem:[#allocation7 + $0x2a0] sm:$0xff]
    %v219 = vld [vmem:[#allocation7 + $0x2a8] sm:$0xf]
    %v220 = vld [vmem:[#allocation7 + $0x2ac] sm:$0xff]
    %v221 = vld [vmem:[#allocation7 + $0x2b4] sm:$0xf]
    %v222 = vld [vmem:[#allocation7 + $0x2b8] sm:$0xff]
    %v223 = vld [vmem:[#allocation7 + $0x2c0] sm:$0xf]
    %v224 = vld [vmem:[#allocation7 + $0x2c4] sm:$0xff]
    %v225 = vld [vmem:[#allocation7 + $0x2cc] sm:$0xf]
    %v226 = vld [vmem:[#allocation7 + $0x2d0] sm:$0xff]
    %v227 = vld [vmem:[#allocation7 + $0x2d8] sm:$0xf]
    %v228 = vld [vmem:[#allocation7 + $0x2dc] sm:$0xff]
    %v229 = vld [vmem:[#allocation7 + $0x2e4] sm:$0xf]
    %v230 = vld [vmem:[#allocation7 + $0x2e8] sm:$0xff]
    %v231 = vld [vmem:[#allocation7 + $0x2f0] sm:$0xf]
    %v232 = vld [vmem:[#allocation7 + $0x2f4] sm:$0xff]
    %v233 = vld [vmem:[#allocation7 + $0x2fc] sm:$0xf]
    %v234 = vld [vmem:[#allocation7 + $0x300] sm:$0xff]
    %v235 = vld [vmem:[#allocation7 + $0x308] sm:$0xf]
    %v236 = vld [vmem:[#allocation7 + $0x30c] sm:$0xff]
    %v237 = vld [vmem:[#allocation7 + $0x314] sm:$0xf]
    %v238 = vld [vmem:[#allocation7 + $0x318] sm:$0xff]
    %v239 = vld [vmem:[#allocation7 + $0x320] sm:$0xf]
    %v240 = vld [vmem:[#allocation7 + $0x324] sm:$0xff]
    %v241 = vld [vmem:[#allocation7 + $0x32c] sm:$0xf]
    %v242 = vld [vmem:[#allocation7 + $0x330] sm:$0xff]
    %v243 = vld [vmem:[#allocation7 + $0x338] sm:$0xf]
    %v244 = vld [vmem:[#allocation7 + $0x33c] sm:$0xff]
    %v245 = vld [vmem:[#allocation7 + $0x344] sm:$0xf]
    %v246 = vld [vmem:[#allocation7 + $0x348] sm:$0xff]
    %v247 = vld [vmem:[#allocation7 + $0x350] sm:$0xf]
    %v248 = vld [vmem:[#allocation7 + $0x354] sm:$0xff]
    %v249 = vld [vmem:[#allocation7 + $0x35c] sm:$0xf]
    %v250 = vld [vmem:[#allocation7 + $0x360] sm:$0xff]
    %v251 = vld [vmem:[#allocation7 + $0x368] sm:$0xf]
    %v252 = vld [vmem:[#allocation7 + $0x36c] sm:$0xff]
    %v253 = vld [vmem:[#allocation7 + $0x374] sm:$0xf]
    %v254 = vld [vmem:[#allocation7 + $0x378] sm:$0xff]
    %v255 = vld [vmem:[#allocation7 + $0x380] sm:$0xf]
    %v256 = vld [vmem:[#allocation7 + $0x384] sm:$0xff]
    %v257 = vld [vmem:[#allocation7 + $0x38c] sm:$0xf]
    %v258 = vld [vmem:[#allocation7 + $0x390] sm:$0xff]
    %v259 = vld [vmem:[#allocation7 + $0x398] sm:$0xf]
    %v260 = vld [vmem:[#allocation7 + $0x39c] sm:$0xff]
    %v261 = vld [vmem:[#allocation7 + $0x3a4] sm:$0xf]
    %v262 = vld [vmem:[#allocation7 + $0x3a8] sm:$0xff]
    %v263 = vld [vmem:[#allocation7 + $0x3b0] sm:$0xf]
    %v264 = vld [vmem:[#allocation7 + $0x3b4] sm:$0xff]
    %v265 = vld [vmem:[#allocation7 + $0x3bc] sm:$0xf]
    %v266 = vld [vmem:[#allocation7 + $0x3c0] sm:$0xff]
    %v267 = vld [vmem:[#allocation7 + $0x3c8] sm:$0xf]
    %v268 = vld [vmem:[#allocation7 + $0x3cc] sm:$0xff]
    %v269 = vld [vmem:[#allocation7 + $0x3d4] sm:$0xf]
    %v270 = vld [vmem:[#allocation7 + $0x3d8] sm:$0xff]
    %v271 = vld [vmem:[#allocation7 + $0x3e0] sm:$0xf]
    %v272 = vld [vmem:[#allocation7 + $0x3e4] sm:$0xff]
    %v273 = vld [vmem:[#allocation7 + $0x3ec] sm:$0xf]
    %v274 = vld [vmem:[#allocation7 + $0x3f0] sm:$0xff]
    %v275 = vld [vmem:[#allocation7 + $0x3f8] sm:$0xf]
    %v276 = vld [vmem:[#allocation7 + $0x3fc] sm:$0xff]
    %v277 = vld [vmem:[#allocation7 + $0x404] sm:$0xf]
    %v278 = vld [vmem:[#allocation7 + $0x408] sm:$0xff]
    %v279 = vld [vmem:[#allocation7 + $0x410] sm:$0xf]
    %v280 = vld [vmem:[#allocation7 + $0x414] sm:$0xff]
    %v281 = vld [vmem:[#allocation7 + $0x41c] sm:$0xf]
    %v282 = vld [vmem:[#allocation7 + $0x420] sm:$0xff]
    %v283 = vld [vmem:[#allocation7 + $0x428] sm:$0xf]
    %v284 = vld [vmem:[#allocation7 + $0x42c] sm:$0xff]
    %v285 = vld [vmem:[#allocation7 + $0x434] sm:$0xf]
    %v286 = vld [vmem:[#allocation7 + $0x438] sm:$0xff]
    %v287 = vld [vmem:[#allocation7 + $0x440] sm:$0xf]
    %v288 = vld [vmem:[#allocation7 + $0x444] sm:$0xff]
    %v289 = vld [vmem:[#allocation7 + $0x44c] sm:$0xf]
    %v290 = vld [vmem:[#allocation7 + $0x450] sm:$0xff]
    %v291 = vld [vmem:[#allocation7 + $0x458] sm:$0xf]
    %v292 = vld [vmem:[#allocation7 + $0x45c] sm:$0xff]
    %v293 = vld [vmem:[#allocation7 + $0x464] sm:$0xf]
    %v294 = vld [vmem:[#allocation7 + $0x468] sm:$0xff]
    %v295 = vld [vmem:[#allocation7 + $0x470] sm:$0xf]
    %v296 = vld [vmem:[#allocation7 + $0x474] sm:$0xff]
    %v297 = vld [vmem:[#allocation7 + $0x47c] sm:$0xf]
    %v298 = vld [vmem:[#allocation7 + $0x480] sm:$0xff]
    %v299 = vld [vmem:[#allocation7 + $0x488] sm:$0xf]
    %v300 = vld [vmem:[#allocation7 + $0x48c] sm:$0xff]
    %v301 = vld [vmem:[#allocation7 + $0x494] sm:$0xf]
    %v302 = vld [vmem:[#allocation7 + $0x498] sm:$0xff]
    %v303 = vld [vmem:[#allocation7 + $0x4a0] sm:$0xf]
    %v304 = vld [vmem:[#allocation7 + $0x4a4] sm:$0xff]
    %v305 = vld [vmem:[#allocation7 + $0x4ac] sm:$0xf]
    %v306 = vld [vmem:[#allocation7 + $0x4b0] sm:$0xff]
    %v307 = vld [vmem:[#allocation7 + $0x4b8] sm:$0xf]
    %v308 = vld [vmem:[#allocation7 + $0x4bc] sm:$0xff]
    %v309 = vld [vmem:[#allocation7 + $0x4c4] sm:$0xf]
    %v310 = vld [vmem:[#allocation7 + $0x4c8] sm:$0xff]
    %v311 = vld [vmem:[#allocation7 + $0x4d0] sm:$0xf]
    %v312 = vld [vmem:[#allocation7 + $0x4d4] sm:$0xff]
    %v313 = vld [vmem:[#allocation7 + $0x4dc] sm:$0xf]
    %v314 = vld [vmem:[#allocation7 + $0x4e0] sm:$0xff]
    %v315 = vld [vmem:[#allocation7 + $0x4e8] sm:$0xf]
    %v316 = vld [vmem:[#allocation7 + $0x4ec] sm:$0xff]
    %v317 = vld [vmem:[#allocation7 + $0x4f4] sm:$0xf]
    %v318 = vld [vmem:[#allocation7 + $0x4f8] sm:$0xff]
    %v319 = vld [vmem:[#allocation7 + $0x500] sm:$0xf]
    %v320 = vld [vmem:[#allocation7 + $0x504] sm:$0xff]
    %v321 = vld [vmem:[#allocation7 + $0x50c] sm:$0xf]
    %v322 = vld [vmem:[#allocation7 + $0x510] sm:$0xff]
    %v323 = vld [vmem:[#allocation7 + $0x518] sm:$0xf]
    %v324 = vld [vmem:[#allocation7 + $0x51c] sm:$0xff]
    %v325 = vld [vmem:[#allocation7 + $0x524] sm:$0xf]
    %v326 = vld [vmem:[#allocation7 + $0x528] sm:$0xff]
    %v327 = vld [vmem:[#allocation7 + $0x530] sm:$0xf]
    %v328 = vld [vmem:[#allocation7 + $0x534] sm:$0xff]
    %v329 = vld [vmem:[#allocation7 + $0x53c] sm:$0xf]
    %v330 = vld [vmem:[#allocation7 + $0x540] sm:$0xff]
    %v331 = vld [vmem:[#allocation7 + $0x548] sm:$0xf]
    %v332 = vld [vmem:[#allocation7 + $0x54c] sm:$0xff]
    %v333 = vld [vmem:[#allocation7 + $0x554] sm:$0xf]
    %v334 = vld [vmem:[#allocation7 + $0x558] sm:$0xff]
    %v335 = vld [vmem:[#allocation7 + $0x560] sm:$0xf]
    %v336 = vld [vmem:[#allocation7 + $0x564] sm:$0xff]
    %v337 = vld [vmem:[#allocation7 + $0x56c] sm:$0xf]
    %v338 = vld [vmem:[#allocation7 + $0x570] sm:$0xff]
    %v339 = vld [vmem:[#allocation7 + $0x578] sm:$0xf]
    %v340 = vld [vmem:[#allocation7 + $0x57c] sm:$0xff]
    %v341 = vld [vmem:[#allocation7 + $0x584] sm:$0xf]
    %v342 = vld [vmem:[#allocation7 + $0x588] sm:$0xff]
    %v343 = vld [vmem:[#allocation7 + $0x590] sm:$0xf]
    %v344 = vld [vmem:[#allocation7 + $0x594] sm:$0xff]
    %v345 = vld [vmem:[#allocation7 + $0x59c] sm:$0xf]
    %v346 = vld [vmem:[#allocation7 + $0x5a0] sm:$0xff]
    %v347 = vld [vmem:[#allocation7 + $0x5a8] sm:$0xf]
    %v348 = vld [vmem:[#allocation7 + $0x5ac] sm:$0xff]
    %v349 = vld [vmem:[#allocation7 + $0x5b4] sm:$0xf]
    %v350 = vld [vmem:[#allocation7 + $0x5b8] sm:$0xff]
    %v351 = vld [vmem:[#allocation7 + $0x5c0] sm:$0xf]
    %v352 = vld [vmem:[#allocation7 + $0x5c4] sm:$0xff]
    %v353 = vld [vmem:[#allocation7 + $0x5cc] sm:$0xf]
    %v354 = vld [vmem:[#allocation7 + $0x5d0] sm:$0xff]
    %v355 = vld [vmem:[#allocation7 + $0x5d8] sm:$0xf]
    %v356 = vld [vmem:[#allocation7 + $0x5dc] sm:$0xff]
    %v357 = vld [vmem:[#allocation7 + $0x5e4] sm:$0xf]
    %v358 = vld [vmem:[#allocation7 + $0x5e8] sm:$0xff]
    %v359 = vld [vmem:[#allocation7 + $0x5f0] sm:$0xf]
    %v360 = vld [vmem:[#allocation7 + $0x5f4] sm:$0xff]
    %v361 = vld [vmem:[#allocation7 + $0x5fc] sm:$0xf]
    %v362 = vld [vmem:[#allocation8] sm:$0x7]
    %v364 = vlaneseq
    %v365 = vshrl.u32 %v364, 7
    %v366 = vsub.s32 0, %v365
    %v367 = vrot.slane %v362, %v366
    %v368 = vlaneseq
    %v369 = vshrl.u32 %v368, 7
    %v370 = vsub.s32 1, %v369
    %v371 = vrot.slane %v362, %v370
    %v372 = vlaneseq
    %v373 = vshrl.u32 %v372, 7
    %v374 = vsub.s32 2, %v373
    %v375 = vrot.slane %v362, %v374
    %v383 = vunpack.c.l.b16 %v102
    %v384 = vunpack.c.h.b16 %v102
    %v385 = vunpack.c.l.b16 %v103
    %v386 = vunpack.c.h.b16 %v103
    %v387 = vunpack.c.l.b16 %v104
    %v388 = vunpack.c.h.b16 %v104
    %v389 = vunpack.c.l.b16 %v105
    %v390 = vunpack.c.h.b16 %v105
    %v391 = vpack.c.b16 %v383, %v383
    %v392 = vpack.c.b16 %v384, %v384
    %v393 = vpack.c.b16 %v385, %v385
    %v394 = vpack.c.b16 %v386, %v386
    %v395 = vpack.c.b16 %v387, %v387
    %v396 = vpack.c.b16 %v388, %v388
    %v397 = vpack.c.b16 %v389, %v389
    %v398 = vpack.c.b16 %v390, %v390
    %v663 = vunpack.c.l.b16 %v106
    %v664 = vunpack.c.h.b16 %v106
    %v665 = vunpack.c.l.b16 %v107
    %v666 = vunpack.c.l.b16 %v108
    %v667 = vunpack.c.h.b16 %v108
    %v668 = vunpack.c.l.b16 %v109
    %v669 = vunpack.c.l.b16 %v110
    %v670 = vunpack.c.h.b16 %v110
    %v671 = vunpack.c.l.b16 %v111
    %v672 = vunpack.c.l.b16 %v112
    %v673 = vunpack.c.h.b16 %v112
    %v674 = vunpack.c.l.b16 %v113
    %v675 = vunpack.c.l.b16 %v114
    %v676 = vunpack.c.h.b16 %v114
    %v677 = vunpack.c.l.b16 %v115
    %v678 = vunpack.c.l.b16 %v116
    %v679 = vunpack.c.h.b16 %v116
    %v680 = vunpack.c.l.b16 %v117
    %v681 = vunpack.c.l.b16 %v118
    %v682 = vunpack.c.h.b16 %v118
    %v683 = vunpack.c.l.b16 %v119
    %v684 = vunpack.c.l.b16 %v120
    %v685 = vunpack.c.h.b16 %v120
    %v686 = vunpack.c.l.b16 %v121
    %v687 = vunpack.c.l.b16 %v122
    %v688 = vunpack.c.h.b16 %v122
    %v689 = vunpack.c.l.b16 %v123
    %v690 = vunpack.c.l.b16 %v124
    %v691 = vunpack.c.h.b16 %v124
    %v692 = vunpack.c.l.b16 %v125
    %v693 = vunpack.c.l.b16 %v126
    %v694 = vunpack.c.h.b16 %v126
    %v695 = vunpack.c.l.b16 %v127
    %v696 = vunpack.c.l.b16 %v128
    %v697 = vunpack.c.h.b16 %v128
    %v698 = vunpack.c.l.b16 %v129
    %v699 = vunpack.c.l.b16 %v130
    %v700 = vunpack.c.h.b16 %v130
    %v701 = vunpack.c.l.b16 %v131
    %v702 = vunpack.c.l.b16 %v132
    %v703 = vunpack.c.h.b16 %v132
    %v704 = vunpack.c.l.b16 %v133
    %v705 = vunpack.c.l.b16 %v134
    %v706 = vunpack.c.h.b16 %v134
    %v707 = vunpack.c.l.b16 %v135
    %v708 = vunpack.c.l.b16 %v136
    %v709 = vunpack.c.h.b16 %v136
    %v710 = vunpack.c.l.b16 %v137
    %v711 = vunpack.c.l.b16 %v138
    %v712 = vunpack.c.h.b16 %v138
    %v713 = vunpack.c.l.b16 %v139
    %v714 = vunpack.c.l.b16 %v140
    %v715 = vunpack.c.h.b16 %v140
    %v716 = vunpack.c.l.b16 %v141
    %v717 = vunpack.c.l.b16 %v142
    %v718 = vunpack.c.h.b16 %v142
    %v719 = vunpack.c.l.b16 %v143
    %v720 = vunpack.c.l.b16 %v144
    %v721 = vunpack.c.h.b16 %v144
    %v722 = vunpack.c.l.b16 %v145
    %v723 = vunpack.c.l.b16 %v146
    %v724 = vunpack.c.h.b16 %v146
    %v725 = vunpack.c.l.b16 %v147
    %v726 = vunpack.c.l.b16 %v148
    %v727 = vunpack.c.h.b16 %v148
    %v728 = vunpack.c.l.b16 %v149
    %v729 = vunpack.c.l.b16 %v150
    %v730 = vunpack.c.h.b16 %v150
    %v731 = vunpack.c.l.b16 %v151
    %v732 = vunpack.c.l.b16 %v152
    %v733 = vunpack.c.h.b16 %v152
    %v734 = vunpack.c.l.b16 %v153
    %v735 = vunpack.c.l.b16 %v154
    %v736 = vunpack.c.h.b16 %v154
    %v737 = vunpack.c.l.b16 %v155
    %v738 = vunpack.c.l.b16 %v156
    %v739 = vunpack.c.h.b16 %v156
    %v740 = vunpack.c.l.b16 %v157
    %v741 = vunpack.c.l.b16 %v158
    %v742 = vunpack.c.h.b16 %v158
    %v743 = vunpack.c.l.b16 %v159
    %v744 = vunpack.c.l.b16 %v160
    %v745 = vunpack.c.h.b16 %v160
    %v746 = vunpack.c.l.b16 %v161
    %v747 = vunpack.c.l.b16 %v162
    %v748 = vunpack.c.h.b16 %v162
    %v749 = vunpack.c.l.b16 %v163
    %v750 = vunpack.c.l.b16 %v164
    %v751 = vunpack.c.h.b16 %v164
    %v752 = vunpack.c.l.b16 %v165
    %v753 = vunpack.c.l.b16 %v166
    %v754 = vunpack.c.h.b16 %v166
    %v755 = vunpack.c.l.b16 %v167
    %v756 = vunpack.c.l.b16 %v168
    %v757 = vunpack.c.h.b16 %v168
    %v758 = vunpack.c.l.b16 %v169
    %v759 = vunpack.c.l.b16 %v170
    %v760 = vunpack.c.h.b16 %v170
    %v761 = vunpack.c.l.b16 %v171
    %v762 = vunpack.c.l.b16 %v172
    %v763 = vunpack.c.h.b16 %v172
    %v764 = vunpack.c.l.b16 %v173
    %v765 = vunpack.c.l.b16 %v174
    %v766 = vunpack.c.h.b16 %v174
    %v767 = vunpack.c.l.b16 %v175
    %v768 = vunpack.c.l.b16 %v176
    %v769 = vunpack.c.h.b16 %v176
    %v770 = vunpack.c.l.b16 %v177
    %v771 = vunpack.c.l.b16 %v178
    %v772 = vunpack.c.h.b16 %v178
    %v773 = vunpack.c.l.b16 %v179
    %v774 = vunpack.c.l.b16 %v180
    %v775 = vunpack.c.h.b16 %v180
    %v776 = vunpack.c.l.b16 %v181
    %v777 = vunpack.c.l.b16 %v182
    %v778 = vunpack.c.h.b16 %v182
    %v779 = vunpack.c.l.b16 %v183
    %v780 = vunpack.c.l.b16 %v184
    %v781 = vunpack.c.h.b16 %v184
    %v782 = vunpack.c.l.b16 %v185
    %v783 = vunpack.c.l.b16 %v186
    %v784 = vunpack.c.h.b16 %v186
    %v785 = vunpack.c.l.b16 %v187
    %v786 = vunpack.c.l.b16 %v188
    %v787 = vunpack.c.h.b16 %v188
    %v788 = vunpack.c.l.b16 %v189
    %v789 = vunpack.c.l.b16 %v190
    %v790 = vunpack.c.h.b16 %v190
    %v791 = vunpack.c.l.b16 %v191
    %v792 = vunpack.c.l.b16 %v192
    %v793 = vunpack.c.h.b16 %v192
    %v794 = vunpack.c.l.b16 %v193
    %v795 = vunpack.c.l.b16 %v194
    %v796 = vunpack.c.h.b16 %v194
    %v797 = vunpack.c.l.b16 %v195
    %v798 = vunpack.c.l.b16 %v196
    %v799 = vunpack.c.h.b16 %v196
    %v800 = vunpack.c.l.b16 %v197
    %v801 = vunpack.c.l.b16 %v198
    %v802 = vunpack.c.h.b16 %v198
    %v803 = vunpack.c.l.b16 %v199
    %v804 = vunpack.c.l.b16 %v200
    %v805 = vunpack.c.h.b16 %v200
    %v806 = vunpack.c.l.b16 %v201
    %v807 = vunpack.c.l.b16 %v202
    %v808 = vunpack.c.h.b16 %v202
    %v809 = vunpack.c.l.b16 %v203
    %v810 = vunpack.c.l.b16 %v204
    %v811 = vunpack.c.h.b16 %v204
    %v812 = vunpack.c.l.b16 %v205
    %v813 = vunpack.c.l.b16 %v206
    %v814 = vunpack.c.h.b16 %v206
    %v815 = vunpack.c.l.b16 %v207
    %v816 = vunpack.c.l.b16 %v208
    %v817 = vunpack.c.h.b16 %v208
    %v818 = vunpack.c.l.b16 %v209
    %v819 = vunpack.c.l.b16 %v210
    %v820 = vunpack.c.h.b16 %v210
    %v821 = vunpack.c.l.b16 %v211
    %v822 = vunpack.c.l.b16 %v212
    %v823 = vunpack.c.h.b16 %v212
    %v824 = vunpack.c.l.b16 %v213
    %v825 = vunpack.c.l.b16 %v214
    %v826 = vunpack.c.h.b16 %v214
    %v827 = vunpack.c.l.b16 %v215
    %v828 = vunpack.c.l.b16 %v216
    %v829 = vunpack.c.h.b16 %v216
    %v830 = vunpack.c.l.b16 %v217
    %v831 = vunpack.c.l.b16 %v218
    %v832 = vunpack.c.h.b16 %v218
    %v833 = vunpack.c.l.b16 %v219
    %v834 = vunpack.c.l.b16 %v220
    %v835 = vunpack.c.h.b16 %v220
    %v836 = vunpack.c.l.b16 %v221
    %v837 = vunpack.c.l.b16 %v222
    %v838 = vunpack.c.h.b16 %v222
    %v839 = vunpack.c.l.b16 %v223
    %v840 = vunpack.c.l.b16 %v224
    %v841 = vunpack.c.h.b16 %v224
    %v842 = vunpack.c.l.b16 %v225
    %v843 = vunpack.c.l.b16 %v226
    %v844 = vunpack.c.h.b16 %v226
    %v845 = vunpack.c.l.b16 %v227
    %v846 = vunpack.c.l.b16 %v228
    %v847 = vunpack.c.h.b16 %v228
    %v848 = vunpack.c.l.b16 %v229
    %v849 = vunpack.c.l.b16 %v230
    %v850 = vunpack.c.h.b16 %v230
    %v851 = vunpack.c.l.b16 %v231
    %v852 = vunpack.c.l.b16 %v232
    %v853 = vunpack.c.h.b16 %v232
    %v854 = vunpack.c.l.b16 %v233
    %v855 = vunpack.c.l.b16 %v234
    %v856 = vunpack.c.h.b16 %v234
    %v857 = vunpack.c.l.b16 %v235
    %v858 = vunpack.c.l.b16 %v236
    %v859 = vunpack.c.h.b16 %v236
    %v860 = vunpack.c.l.b16 %v237
    %v861 = vunpack.c.l.b16 %v238
    %v862 = vunpack.c.h.b16 %v238
    %v863 = vunpack.c.l.b16 %v239
    %v864 = vunpack.c.l.b16 %v240
    %v865 = vunpack.c.h.b16 %v240
    %v866 = vunpack.c.l.b16 %v241
    %v867 = vunpack.c.l.b16 %v242
    %v868 = vunpack.c.h.b16 %v242
    %v869 = vunpack.c.l.b16 %v243
    %v870 = vunpack.c.l.b16 %v244
    %v871 = vunpack.c.h.b16 %v244
    %v872 = vunpack.c.l.b16 %v245
    %v873 = vunpack.c.l.b16 %v246
    %v874 = vunpack.c.h.b16 %v246
    %v875 = vunpack.c.l.b16 %v247
    %v876 = vunpack.c.l.b16 %v248
    %v877 = vunpack.c.h.b16 %v248
    %v878 = vunpack.c.l.b16 %v249
    %v879 = vunpack.c.l.b16 %v250
    %v880 = vunpack.c.h.b16 %v250
    %v881 = vunpack.c.l.b16 %v251
    %v882 = vunpack.c.l.b16 %v252
    %v883 = vunpack.c.h.b16 %v252
    %v884 = vunpack.c.l.b16 %v253
    %v885 = vunpack.c.l.b16 %v254
    %v886 = vunpack.c.h.b16 %v254
    %v887 = vunpack.c.l.b16 %v255
    %v888 = vunpack.c.l.b16 %v256
    %v889 = vunpack.c.h.b16 %v256
    %v890 = vunpack.c.l.b16 %v257
    %v891 = vunpack.c.l.b16 %v258
    %v892 = vunpack.c.h.b16 %v258
    %v893 = vunpack.c.l.b16 %v259
    %v894 = vunpack.c.l.b16 %v260
    %v895 = vunpack.c.h.b16 %v260
    %v896 = vunpack.c.l.b16 %v261
    %v897 = vunpack.c.l.b16 %v262
    %v898 = vunpack.c.h.b16 %v262
    %v899 = vunpack.c.l.b16 %v263
    %v900 = vunpack.c.l.b16 %v264
    %v901 = vunpack.c.h.b16 %v264
    %v902 = vunpack.c.l.b16 %v265
    %v903 = vunpack.c.l.b16 %v266
    %v904 = vunpack.c.h.b16 %v266
    %v905 = vunpack.c.l.b16 %v267
    %v906 = vunpack.c.l.b16 %v268
    %v907 = vunpack.c.h.b16 %v268
    %v908 = vunpack.c.l.b16 %v269
    %v909 = vunpack.c.l.b16 %v270
    %v910 = vunpack.c.h.b16 %v270
    %v911 = vunpack.c.l.b16 %v271
    %v912 = vunpack.c.l.b16 %v272
    %v913 = vunpack.c.h.b16 %v272
    %v914 = vunpack.c.l.b16 %v273
    %v915 = vunpack.c.l.b16 %v274
    %v916 = vunpack.c.h.b16 %v274
    %v917 = vunpack.c.l.b16 %v275
    %v918 = vunpack.c.l.b16 %v276
    %v919 = vunpack.c.h.b16 %v276
    %v920 = vunpack.c.l.b16 %v277
    %v921 = vunpack.c.l.b16 %v278
    %v922 = vunpack.c.h.b16 %v278
    %v923 = vunpack.c.l.b16 %v279
    %v924 = vunpack.c.l.b16 %v280
    %v925 = vunpack.c.h.b16 %v280
    %v926 = vunpack.c.l.b16 %v281
    %v927 = vunpack.c.l.b16 %v282
    %v928 = vunpack.c.h.b16 %v282
    %v929 = vunpack.c.l.b16 %v283
    %v930 = vunpack.c.l.b16 %v284
    %v931 = vunpack.c.h.b16 %v284
    %v932 = vunpack.c.l.b16 %v285
    %v933 = vunpack.c.l.b16 %v286
    %v934 = vunpack.c.h.b16 %v286
    %v935 = vunpack.c.l.b16 %v287
    %v936 = vunpack.c.l.b16 %v288
    %v937 = vunpack.c.h.b16 %v288
    %v938 = vunpack.c.l.b16 %v289
    %v939 = vunpack.c.l.b16 %v290
    %v940 = vunpack.c.h.b16 %v290
    %v941 = vunpack.c.l.b16 %v291
    %v942 = vunpack.c.l.b16 %v292
    %v943 = vunpack.c.h.b16 %v292
    %v944 = vunpack.c.l.b16 %v293
    %v945 = vunpack.c.l.b16 %v294
    %v946 = vunpack.c.h.b16 %v294
    %v947 = vunpack.c.l.b16 %v295
    %v948 = vunpack.c.l.b16 %v296
    %v949 = vunpack.c.h.b16 %v296
    %v950 = vunpack.c.l.b16 %v297
    %v951 = vunpack.c.l.b16 %v298
    %v952 = vunpack.c.h.b16 %v298
    %v953 = vunpack.c.l.b16 %v299
    %v954 = vunpack.c.l.b16 %v300
    %v955 = vunpack.c.h.b16 %v300
    %v956 = vunpack.c.l.b16 %v301
    %v957 = vunpack.c.l.b16 %v302
    %v958 = vunpack.c.h.b16 %v302
    %v959 = vunpack.c.l.b16 %v303
    %v960 = vunpack.c.l.b16 %v304
    %v961 = vunpack.c.h.b16 %v304
    %v962 = vunpack.c.l.b16 %v305
    %v963 = vunpack.c.l.b16 %v306
    %v964 = vunpack.c.h.b16 %v306
    %v965 = vunpack.c.l.b16 %v307
    %v966 = vunpack.c.l.b16 %v308
    %v967 = vunpack.c.h.b16 %v308
    %v968 = vunpack.c.l.b16 %v309
    %v969 = vunpack.c.l.b16 %v310
    %v970 = vunpack.c.h.b16 %v310
    %v971 = vunpack.c.l.b16 %v311
    %v972 = vunpack.c.l.b16 %v312
    %v973 = vunpack.c.h.b16 %v312
    %v974 = vunpack.c.l.b16 %v313
    %v975 = vunpack.c.l.b16 %v314
    %v976 = vunpack.c.h.b16 %v314
    %v977 = vunpack.c.l.b16 %v315
    %v978 = vunpack.c.l.b16 %v316
    %v979 = vunpack.c.h.b16 %v316
    %v980 = vunpack.c.l.b16 %v317
    %v981 = vunpack.c.l.b16 %v318
    %v982 = vunpack.c.h.b16 %v318
    %v983 = vunpack.c.l.b16 %v319
    %v984 = vunpack.c.l.b16 %v320
    %v985 = vunpack.c.h.b16 %v320
    %v986 = vunpack.c.l.b16 %v321
    %v987 = vunpack.c.l.b16 %v322
    %v988 = vunpack.c.h.b16 %v322
    %v989 = vunpack.c.l.b16 %v323
    %v990 = vunpack.c.l.b16 %v324
    %v991 = vunpack.c.h.b16 %v324
    %v992 = vunpack.c.l.b16 %v325
    %v993 = vunpack.c.l.b16 %v326
    %v994 = vunpack.c.h.b16 %v326
    %v995 = vunpack.c.l.b16 %v327
    %v996 = vunpack.c.l.b16 %v328
    %v997 = vunpack.c.h.b16 %v328
    %v998 = vunpack.c.l.b16 %v329
    %v999 = vunpack.c.l.b16 %v330
    %v1000 = vunpack.c.h.b16 %v330
    %v1001 = vunpack.c.l.b16 %v331
    %v1002 = vunpack.c.l.b16 %v332
    %v1003 = vunpack.c.h.b16 %v332
    %v1004 = vunpack.c.l.b16 %v333
    %v1005 = vunpack.c.l.b16 %v334
    %v1006 = vunpack.c.h.b16 %v334
    %v1007 = vunpack.c.l.b16 %v335
    %v1008 = vunpack.c.l.b16 %v336
    %v1009 = vunpack.c.h.b16 %v336
    %v1010 = vunpack.c.l.b16 %v337
    %v1011 = vunpack.c.l.b16 %v338
    %v1012 = vunpack.c.h.b16 %v338
    %v1013 = vunpack.c.l.b16 %v339
    %v1014 = vunpack.c.l.b16 %v340
    %v1015 = vunpack.c.h.b16 %v340
    %v1016 = vunpack.c.l.b16 %v341
    %v1017 = vunpack.c.l.b16 %v342
    %v1018 = vunpack.c.h.b16 %v342
    %v1019 = vunpack.c.l.b16 %v343
    %v1020 = vunpack.c.l.b16 %v344
    %v1021 = vunpack.c.h.b16 %v344
    %v1022 = vunpack.c.l.b16 %v345
    %v1023 = vunpack.c.l.b16 %v346
    %v1024 = vunpack.c.h.b16 %v346
    %v1025 = vunpack.c.l.b16 %v347
    %v1026 = vunpack.c.l.b16 %v348
    %v1027 = vunpack.c.h.b16 %v348
    %v1028 = vunpack.c.l.b16 %v349
    %v1029 = vunpack.c.l.b16 %v350
    %v1030 = vunpack.c.h.b16 %v350
    %v1031 = vunpack.c.l.b16 %v351
    %v1032 = vunpack.c.l.b16 %v352
    %v1033 = vunpack.c.h.b16 %v352
    %v1034 = vunpack.c.l.b16 %v353
    %v1035 = vunpack.c.l.b16 %v354
    %v1036 = vunpack.c.h.b16 %v354
    %v1037 = vunpack.c.l.b16 %v355
    %v1038 = vunpack.c.l.b16 %v356
    %v1039 = vunpack.c.h.b16 %v356
    %v1040 = vunpack.c.l.b16 %v357
    %v1041 = vunpack.c.l.b16 %v358
    %v1042 = vunpack.c.h.b16 %v358
    %v1043 = vunpack.c.l.b16 %v359
    %v1044 = vunpack.c.l.b16 %v360
    %v1045 = vunpack.c.h.b16 %v360
    %v1046 = vunpack.c.l.b16 %v361
    %v1047 = vpack.c.b16 %v666, %v663
    %v1048 = vpack.c.b16 %v667, %v664
    %v1049 = vpack.c.b16 %v668, %v665
    %v1050 = vpack.c.b16 %v672, %v669
    %v1051 = vpack.c.b16 %v673, %v670
    %v1052 = vpack.c.b16 %v674, %v671
    %v1053 = vpack.c.b16 %v678, %v675
    %v1054 = vpack.c.b16 %v679, %v676
    %v1055 = vpack.c.b16 %v680, %v677
    %v1056 = vpack.c.b16 %v684, %v681
    %v1057 = vpack.c.b16 %v685, %v682
    %v1058 = vpack.c.b16 %v686, %v683
    %v1059 = vpack.c.b16 %v690, %v687
    %v1060 = vpack.c.b16 %v691, %v688
    %v1061 = vpack.c.b16 %v692, %v689
    %v1062 = vpack.c.b16 %v696, %v693
    %v1063 = vpack.c.b16 %v697, %v694
    %v1064 = vpack.c.b16 %v698, %v695
    %v1065 = vpack.c.b16 %v702, %v699
    %v1066 = vpack.c.b16 %v703, %v700
    %v1067 = vpack.c.b16 %v704, %v701
    %v1068 = vpack.c.b16 %v708, %v705
    %v1069 = vpack.c.b16 %v709, %v706
    %v1070 = vpack.c.b16 %v710, %v707
    %v1071 = vpack.c.b16 %v714, %v711
    %v1072 = vpack.c.b16 %v715, %v712
    %v1073 = vpack.c.b16 %v716, %v713
    %v1074 = vpack.c.b16 %v720, %v717
    %v1075 = vpack.c.b16 %v721, %v718
    %v1076 = vpack.c.b16 %v722, %v719
    %v1077 = vpack.c.b16 %v726, %v723
    %v1078 = vpack.c.b16 %v727, %v724
    %v1079 = vpack.c.b16 %v728, %v725
    %v1080 = vpack.c.b16 %v732, %v729
    %v1081 = vpack.c.b16 %v733, %v730
    %v1082 = vpack.c.b16 %v734, %v731
    %v1083 = vpack.c.b16 %v738, %v735
    %v1084 = vpack.c.b16 %v739, %v736
    %v1085 = vpack.c.b16 %v740, %v737
    %v1086 = vpack.c.b16 %v744, %v741
    %v1087 = vpack.c.b16 %v745, %v742
    %v1088 = vpack.c.b16 %v746, %v743
    %v1089 = vpack.c.b16 %v750, %v747
    %v1090 = vpack.c.b16 %v751, %v748
    %v1091 = vpack.c.b16 %v752, %v749
    %v1092 = vpack.c.b16 %v756, %v753
    %v1093 = vpack.c.b16 %v757, %v754
    %v1094 = vpack.c.b16 %v758, %v755
    %v1095 = vpack.c.b16 %v762, %v759
    %v1096 = vpack.c.b16 %v763, %v760
    %v1097 = vpack.c.b16 %v764, %v761
    %v1098 = vpack.c.b16 %v768, %v765
    %v1099 = vpack.c.b16 %v769, %v766
    %v1100 = vpack.c.b16 %v770, %v767
    %v1101 = vpack.c.b16 %v774, %v771
    %v1102 = vpack.c.b16 %v775, %v772
    %v1103 = vpack.c.b16 %v776, %v773
    %v1104 = vpack.c.b16 %v780, %v777
    %v1105 = vpack.c.b16 %v781, %v778
    %v1106 = vpack.c.b16 %v782, %v779
    %v1107 = vpack.c.b16 %v786, %v783
    %v1108 = vpack.c.b16 %v787, %v784
    %v1109 = vpack.c.b16 %v788, %v785
    %v1110 = vpack.c.b16 %v792, %v789
    %v1111 = vpack.c.b16 %v793, %v790
    %v1112 = vpack.c.b16 %v794, %v791
    %v1113 = vpack.c.b16 %v798, %v795
    %v1114 = vpack.c.b16 %v799, %v796
    %v1115 = vpack.c.b16 %v800, %v797
    %v1116 = vpack.c.b16 %v804, %v801
    %v1117 = vpack.c.b16 %v805, %v802
    %v1118 = vpack.c.b16 %v806, %v803
    %v1119 = vpack.c.b16 %v810, %v807
    %v1120 = vpack.c.b16 %v811, %v808
    %v1121 = vpack.c.b16 %v812, %v809
    %v1122 = vpack.c.b16 %v816, %v813
    %v1123 = vpack.c.b16 %v817, %v814
    %v1124 = vpack.c.b16 %v818, %v815
    %v1125 = vpack.c.b16 %v822, %v819
    %v1126 = vpack.c.b16 %v823, %v820
    %v1127 = vpack.c.b16 %v824, %v821
    %v1128 = vpack.c.b16 %v828, %v825
    %v1129 = vpack.c.b16 %v829, %v826
    %v1130 = vpack.c.b16 %v830, %v827
    %v1131 = vpack.c.b16 %v834, %v831
    %v1132 = vpack.c.b16 %v835, %v832
    %v1133 = vpack.c.b16 %v836, %v833
    %v1134 = vpack.c.b16 %v840, %v837
    %v1135 = vpack.c.b16 %v841, %v838
    %v1136 = vpack.c.b16 %v842, %v839
    %v1137 = vpack.c.b16 %v846, %v843
    %v1138 = vpack.c.b16 %v847, %v844
    %v1139 = vpack.c.b16 %v848, %v845
    %v1140 = vpack.c.b16 %v852, %v849
    %v1141 = vpack.c.b16 %v853, %v850
    %v1142 = vpack.c.b16 %v854, %v851
    %v1143 = vpack.c.b16 %v858, %v855
    %v1144 = vpack.c.b16 %v859, %v856
    %v1145 = vpack.c.b16 %v860, %v857
    %v1146 = vpack.c.b16 %v864, %v861
    %v1147 = vpack.c.b16 %v865, %v862
    %v1148 = vpack.c.b16 %v866, %v863
    %v1149 = vpack.c.b16 %v870, %v867
    %v1150 = vpack.c.b16 %v871, %v868
    %v1151 = vpack.c.b16 %v872, %v869
    %v1152 = vpack.c.b16 %v876, %v873
    %v1153 = vpack.c.b16 %v877, %v874
    %v1154 = vpack.c.b16 %v878, %v875
    %v1155 = vpack.c.b16 %v882, %v879
    %v1156 = vpack.c.b16 %v883, %v880
    %v1157 = vpack.c.b16 %v884, %v881
    %v1158 = vpack.c.b16 %v888, %v885
    %v1159 = vpack.c.b16 %v889, %v886
    %v1160 = vpack.c.b16 %v890, %v887
    %v1161 = vpack.c.b16 %v894, %v891
    %v1162 = vpack.c.b16 %v895, %v892
    %v1163 = vpack.c.b16 %v896, %v893
    %v1164 = vpack.c.b16 %v900, %v897
    %v1165 = vpack.c.b16 %v901, %v898
    %v1166 = vpack.c.b16 %v902, %v899
    %v1167 = vpack.c.b16 %v906, %v903
    %v1168 = vpack.c.b16 %v907, %v904
    %v1169 = vpack.c.b16 %v908, %v905
    %v1170 = vpack.c.b16 %v912, %v909
    %v1171 = vpack.c.b16 %v913, %v910
    %v1172 = vpack.c.b16 %v914, %v911
    %v1173 = vpack.c.b16 %v918, %v915
    %v1174 = vpack.c.b16 %v919, %v916
    %v1175 = vpack.c.b16 %v920, %v917
    %v1176 = vpack.c.b16 %v924, %v921
    %v1177 = vpack.c.b16 %v925, %v922
    %v1178 = vpack.c.b16 %v926, %v923
    %v1179 = vpack.c.b16 %v930, %v927
    %v1180 = vpack.c.b16 %v931, %v928
    %v1181 = vpack.c.b16 %v932, %v929
    %v1182 = vpack.c.b16 %v936, %v933
    %v1183 = vpack.c.b16 %v937, %v934
    %v1184 = vpack.c.b16 %v938, %v935
    %v1185 = vpack.c.b16 %v942, %v939
    %v1186 = vpack.c.b16 %v943, %v940
    %v1187 = vpack.c.b16 %v944, %v941
    %v1188 = vpack.c.b16 %v948, %v945
    %v1189 = vpack.c.b16 %v949, %v946
    %v1190 = vpack.c.b16 %v950, %v947
    %v1191 = vpack.c.b16 %v954, %v951
    %v1192 = vpack.c.b16 %v955, %v952
    %v1193 = vpack.c.b16 %v956, %v953
    %v1194 = vpack.c.b16 %v960, %v957
    %v1195 = vpack.c.b16 %v961, %v958
    %v1196 = vpack.c.b16 %v962, %v959
    %v1197 = vpack.c.b16 %v966, %v963
    %v1198 = vpack.c.b16 %v967, %v964
    %v1199 = vpack.c.b16 %v968, %v965
    %v1200 = vpack.c.b16 %v972, %v969
    %v1201 = vpack.c.b16 %v973, %v970
    %v1202 = vpack.c.b16 %v974, %v971
    %v1203 = vpack.c.b16 %v978, %v975
    %v1204 = vpack.c.b16 %v979, %v976
    %v1205 = vpack.c.b16 %v980, %v977
    %v1206 = vpack.c.b16 %v984, %v981
    %v1207 = vpack.c.b16 %v985, %v982
    %v1208 = vpack.c.b16 %v986, %v983
    %v1209 = vpack.c.b16 %v990, %v987
    %v1210 = vpack.c.b16 %v991, %v988
    %v1211 = vpack.c.b16 %v992, %v989
    %v1212 = vpack.c.b16 %v996, %v993
    %v1213 = vpack.c.b16 %v997, %v994
    %v1214 = vpack.c.b16 %v998, %v995
    %v1215 = vpack.c.b16 %v1002, %v999
    %v1216 = vpack.c.b16 %v1003, %v1000
    %v1217 = vpack.c.b16 %v1004, %v1001
    %v1218 = vpack.c.b16 %v1008, %v1005
    %v1219 = vpack.c.b16 %v1009, %v1006
    %v1220 = vpack.c.b16 %v1010, %v1007
    %v1221 = vpack.c.b16 %v1014, %v1011
    %v1222 = vpack.c.b16 %v1015, %v1012
    %v1223 = vpack.c.b16 %v1016, %v1013
    %v1224 = vpack.c.b16 %v1020, %v1017
    %v1225 = vpack.c.b16 %v1021, %v1018
    %v1226 = vpack.c.b16 %v1022, %v1019
    %v1227 = vpack.c.b16 %v1026, %v1023
    %v1228 = vpack.c.b16 %v1027, %v1024
    %v1229 = vpack.c.b16 %v1028, %v1025
    %v1230 = vpack.c.b16 %v1032, %v1029
    %v1231 = vpack.c.b16 %v1033, %v1030
    %v1232 = vpack.c.b16 %v1034, %v1031
    %v1233 = vpack.c.b16 %v1038, %v1035
    %v1234 = vpack.c.b16 %v1039, %v1036
    %v1235 = vpack.c.b16 %v1040, %v1037
    %v1236 = vpack.c.b16 %v1044, %v1041
    %v1237 = vpack.c.b16 %v1045, %v1042
    %v1238 = vpack.c.b16 %v1046, %v1043
    %1431 = vmatprep.subr.bf16.mxu0 %v1048
    %1432 = vmatpush1.bf16.msra.mxu0 %v1047
    %1433 = vmatprep.subr.bf16.mxu0 %v1051
    %1434 = vmatpush1.bf16.msra.mxu0 %v1050
    %1435 = vmatprep.subr.bf16.mxu0 %v1054
    %1436 = vmatpush1.bf16.msra.mxu0 %v1053
    %1437 = vmatprep.subr.bf16.mxu0 %v1057
    %1438 = vmatpush1.bf16.msra.mxu0 %v1056
    %1439 = vmatprep.subr.bf16.mxu0 %v1060
    %1440 = vmatpush1.bf16.msra.mxu0 %v1059
    %1441 = vmatprep.subr.bf16.mxu0 %v1063
    %1442 = vmatpush1.bf16.msra.mxu0 %v1062
    %1443 = vmatprep.subr.bf16.mxu0 %v1066
    %1444 = vmatpush1.bf16.msra.mxu0 %v1065
    %1445 = vmatprep.subr.bf16.mxu0 %v1069
    %1446 = vmatpush1.bf16.msra.mxu0 %v1068
    %1447 = vmatprep.subr.bf16.mxu0 %v1072
    %1448 = vmatpush1.bf16.msra.mxu0 %v1071
    %1449 = vmatprep.subr.bf16.mxu0 %v1075
    %1450 = vmatpush1.bf16.msra.mxu0 %v1074
    %1451 = vmatprep.subr.bf16.mxu0 %v1078
    %1452 = vmatpush1.bf16.msra.mxu0 %v1077
    %1453 = vmatprep.subr.bf16.mxu0 %v1081
    %1454 = vmatpush1.bf16.msra.mxu0 %v1080
    %1455 = vmatprep.subr.bf16.mxu0 %v1084
    %1456 = vmatpush1.bf16.msra.mxu0 %v1083
    %1457 = vmatprep.subr.bf16.mxu0 %v1087
    %1458 = vmatpush1.bf16.msra.mxu0 %v1086
    %1459 = vmatprep.subr.bf16.mxu0 %v1090
    %1460 = vmatpush1.bf16.msra.mxu0 %v1089
    %1461 = vmatprep.subr.bf16.mxu0 %v1093
    %1462 = vmatpush1.bf16.msra.mxu0 %v1092
    %1463 = vmatprep.mubr.bf16.mxu0 %v392
    %1464 = vmatmul.mubr.bf16.gmra.mrb[0].mxu0 %v391
    %v1465 = vpop.f32.mrb[0].mxu0
    %v1466 = vadd.f32 %v367, %v1465
    %v1467 = vpop.f32.mrb[0].mxu0
    %v1468 = vadd.f32 %v371, %v1467
    %v1469 = vpop.f32.mrb[0].mxu0
    %v1470 = vpop.f32.mrb[0].mxu0
    %1471 = vdwg.mxu0
    %1472 = vmatprep.subr.bf16.mxu0 %v1096
    %1473 = vmatpush1.bf16.msra.mxu0 %v1095
    %1474 = vmatprep.subr.bf16.mxu0 %v1099
    %1475 = vmatpush1.bf16.msra.mxu0 %v1098
    %1476 = vmatprep.subr.bf16.mxu0 %v1102
    %1477 = vmatpush1.bf16.msra.mxu0 %v1101
    %1478 = vmatprep.subr.bf16.mxu0 %v1105
    %1479 = vmatpush1.bf16.msra.mxu0 %v1104
    %1480 = vmatprep.subr.bf16.mxu0 %v1108
    %1481 = vmatpush1.bf16.msra.mxu0 %v1107
    %1482 = vmatprep.subr.bf16.mxu0 %v1111
    %1483 = vmatpush1.bf16.msra.mxu0 %v1110
    %1484 = vmatprep.subr.bf16.mxu0 %v1114
    %1485 = vmatpush1.bf16.msra.mxu0 %v1113
    %1486 = vmatprep.subr.bf16.mxu0 %v1117
    %1487 = vmatpush1.bf16.msra.mxu0 %v1116
    %1488 = vmatprep.subr.bf16.mxu0 %v1120
    %1489 = vmatpush1.bf16.msra.mxu0 %v1119
    %1490 = vmatprep.subr.bf16.mxu0 %v1123
    %1491 = vmatpush1.bf16.msra.mxu0 %v1122
    %1492 = vmatprep.subr.bf16.mxu0 %v1126
    %1493 = vmatpush1.bf16.msra.mxu0 %v1125
    %1494 = vmatprep.subr.bf16.mxu0 %v1129
    %1495 = vmatpush1.bf16.msra.mxu0 %v1128
    %1496 = vmatprep.subr.bf16.mxu0 %v1132
    %1497 = vmatpush1.bf16.msra.mxu0 %v1131
    %1498 = vmatprep.subr.bf16.mxu0 %v1135
    %1499 = vmatpush1.bf16.msra.mxu0 %v1134
    %1500 = vmatprep.subr.bf16.mxu0 %v1138
    %1501 = vmatpush1.bf16.msra.mxu0 %v1137
    %1502 = vmatprep.subr.bf16.mxu0 %v1141
    %1503 = vmatpush1.bf16.msra.mxu0 %v1140
    %1504 = vmatprep.mubr.bf16.mxu0 %v394
    %1505 = vmatmul.mubr.bf16.gmra.mrb[0].mxu0 %v393
    %v1506 = vpop.f32.mrb[0].mxu0
    %v1507 = vadd.f32 %v1466, %v1506
    %v1508 = vpop.f32.mrb[0].mxu0
    %v1509 = vadd.f32 %v1468, %v1508
    %v1510 = vpop.f32.mrb[0].mxu0
    %v1511 = vpop.f32.mrb[0].mxu0
    %1512 = vdwg.mxu0
    %1513 = vmatprep.subr.bf16.mxu0 %v1144
    %1514 = vmatpush1.bf16.msra.mxu0 %v1143
    %1515 = vmatprep.subr.bf16.mxu0 %v1147
    %1516 = vmatpush1.bf16.msra.mxu0 %v1146
    %1517 = vmatprep.subr.bf16.mxu0 %v1150
    %1518 = vmatpush1.bf16.msra.mxu0 %v1149
    %1519 = vmatprep.subr.bf16.mxu0 %v1153
    %1520 = vmatpush1.bf16.msra.mxu0 %v1152
    %1521 = vmatprep.subr.bf16.mxu0 %v1156
    %1522 = vmatpush1.bf16.msra.mxu0 %v1155
    %1523 = vmatprep.subr.bf16.mxu0 %v1159
    %1524 = vmatpush1.bf16.msra.mxu0 %v1158
    %1525 = vmatprep.subr.bf16.mxu0 %v1162
    %1526 = vmatpush1.bf16.msra.mxu0 %v1161
    %1527 = vmatprep.subr.bf16.mxu0 %v1165
    %1528 = vmatpush1.bf16.msra.mxu0 %v1164
    %1529 = vmatprep.subr.bf16.mxu0 %v1168
    %1530 = vmatpush1.bf16.msra.mxu0 %v1167
    %1531 = vmatprep.subr.bf16.mxu0 %v1171
    %1532 = vmatpush1.bf16.msra.mxu0 %v1170
    %1533 = vmatprep.subr.bf16.mxu0 %v1174
    %1534 = vmatpush1.bf16.msra.mxu0 %v1173
    %1535 = vmatprep.subr.bf16.mxu0 %v1177
    %1536 = vmatpush1.bf16.msra.mxu0 %v1176
    %1537 = vmatprep.subr.bf16.mxu0 %v1180
    %1538 = vmatpush1.bf16.msra.mxu0 %v1179
    %1539 = vmatprep.subr.bf16.mxu0 %v1183
    %1540 = vmatpush1.bf16.msra.mxu0 %v1182
    %1541 = vmatprep.subr.bf16.mxu0 %v1186
    %1542 = vmatpush1.bf16.msra.mxu0 %v1185
    %1543 = vmatprep.subr.bf16.mxu0 %v1189
    %1544 = vmatpush1.bf16.msra.mxu0 %v1188
    %1545 = vmatprep.mubr.bf16.mxu0 %v396
    %1546 = vmatmul.mubr.bf16.gmra.mrb[0].mxu0 %v395
    %v1547 = vpop.f32.mrb[0].mxu0
    %v1548 = vadd.f32 %v1507, %v1547
    %v1549 = vpop.f32.mrb[0].mxu0
    %v1550 = vadd.f32 %v1509, %v1549
    %v1551 = vpop.f32.mrb[0].mxu0
    %v1552 = vpop.f32.mrb[0].mxu0
    %1553 = vdwg.mxu0
    %1554 = vmatprep.subr.bf16.mxu0 %v1192
    %1555 = vmatpush1.bf16.msra.mxu0 %v1191
    %1556 = vmatprep.subr.bf16.mxu0 %v1195
    %1557 = vmatpush1.bf16.msra.mxu0 %v1194
    %1558 = vmatprep.subr.bf16.mxu0 %v1198
    %1559 = vmatpush1.bf16.msra.mxu0 %v1197
    %1560 = vmatprep.subr.bf16.mxu0 %v1201
    %1561 = vmatpush1.bf16.msra.mxu0 %v1200
    %1562 = vmatprep.subr.bf16.mxu0 %v1204
    %1563 = vmatpush1.bf16.msra.mxu0 %v1203
    %1564 = vmatprep.subr.bf16.mxu0 %v1207
    %1565 = vmatpush1.bf16.msra.mxu0 %v1206
    %1566 = vmatprep.subr.bf16.mxu0 %v1210
    %1567 = vmatpush1.bf16.msra.mxu0 %v1209
    %1568 = vmatprep.subr.bf16.mxu0 %v1213
    %1569 = vmatpush1.bf16.msra.mxu0 %v1212
    %1570 = vmatprep.subr.bf16.mxu0 %v1216
    %1571 = vmatpush1.bf16.msra.mxu0 %v1215
    %1572 = vmatprep.subr.bf16.mxu0 %v1219
    %1573 = vmatpush1.bf16.msra.mxu0 %v1218
    %1574 = vmatprep.subr.bf16.mxu0 %v1222
    %1575 = vmatpush1.bf16.msra.mxu0 %v1221
    %1576 = vmatprep.subr.bf16.mxu0 %v1225
    %1577 = vmatpush1.bf16.msra.mxu0 %v1224
    %1578 = vmatprep.subr.bf16.mxu0 %v1228
    %1579 = vmatpush1.bf16.msra.mxu0 %v1227
    %1580 = vmatprep.subr.bf16.mxu0 %v1231
    %1581 = vmatpush1.bf16.msra.mxu0 %v1230
    %1582 = vmatprep.subr.bf16.mxu0 %v1234
    %1583 = vmatpush1.bf16.msra.mxu0 %v1233
    %1584 = vmatprep.subr.bf16.mxu0 %v1237
    %1585 = vmatpush1.bf16.msra.mxu0 %v1236
    %1586 = vmatprep.mubr.bf16.mxu0 %v398
    %1587 = vmatmul.mubr.bf16.gmra.mrb[0].mxu0 %v397
    %v1588 = vpop.f32.mrb[0].mxu0
    %v1589 = vadd.f32 %v1548, %v1588
    %v1590 = vpop.f32.mrb[0].mxu0
    %v1591 = vadd.f32 %v1550, %v1590
    %v1592 = vpop.f32.mrb[0].mxu0
    %v1593 = vpop.f32.mrb[0].mxu0
    %1594 = vdwg.mxu0
    %1595 = vmatprep.subr.bf16.mxu0 0
    %1596 = vmatpush1.bf16.msra.mxu0 %v1049
    %1597 = vmatprep.subr.bf16.mxu0 0
    %1598 = vmatpush1.bf16.msra.mxu0 %v1052
    %1599 = vmatprep.subr.bf16.mxu0 0
    %1600 = vmatpush1.bf16.msra.mxu0 %v1055
    %1601 = vmatprep.subr.bf16.mxu0 0
    %1602 = vmatpush1.bf16.msra.mxu0 %v1058
    %1603 = vmatprep.subr.bf16.mxu0 0
    %1604 = vmatpush1.bf16.msra.mxu0 %v1061
    %1605 = vmatprep.subr.bf16.mxu0 0
    %1606 = vmatpush1.bf16.msra.mxu0 %v1064
    %1607 = vmatprep.subr.bf16.mxu0 0
    %1608 = vmatpush1.bf16.msra.mxu0 %v1067
    %1609 = vmatprep.subr.bf16.mxu0 0
    %1610 = vmatpush1.bf16.msra.mxu0 %v1070
    %1611 = vmatprep.subr.bf16.mxu0 0
    %1612 = vmatpush1.bf16.msra.mxu0 %v1073
    %1613 = vmatprep.subr.bf16.mxu0 0
    %1614 = vmatpush1.bf16.msra.mxu0 %v1076
    %1615 = vmatprep.subr.bf16.mxu0 0
    %1616 = vmatpush1.bf16.msra.mxu0 %v1079
    %1617 = vmatprep.subr.bf16.mxu0 0
    %1618 = vmatpush1.bf16.msra.mxu0 %v1082
    %1619 = vmatprep.subr.bf16.mxu0 0
    %1620 = vmatpush1.bf16.msra.mxu0 %v1085
    %1621 = vmatprep.subr.bf16.mxu0 0
    %1622 = vmatpush1.bf16.msra.mxu0 %v1088
    %1623 = vmatprep.subr.bf16.mxu0 0
    %1624 = vmatpush1.bf16.msra.mxu0 %v1091
    %1625 = vmatprep.subr.bf16.mxu0 0
    %1626 = vmatpush1.bf16.msra.mxu0 %v1094
    %1627 = vmatprep.mubr.bf16.mxu0 %v392
    %1628 = vmatmul.mubr.bf16.gmra.mrb[0].mxu0 %v391
    %v1629 = vpop.f32.mrb[0].mxu0
    %v1630 = vadd.f32 %v375, %v1629
    %v1631 = vpop.f32.mrb[0].mxu0
    %v1632 = vpop.f32.mrb[0].mxu0
    %v1633 = vpop.f32.mrb[0].mxu0
    %1634 = vdwg.mxu0
    %1635 = vmatprep.subr.bf16.mxu0 0
    %1636 = vmatpush1.bf16.msra.mxu0 %v1097
    %1637 = vmatprep.subr.bf16.mxu0 0
    %1638 = vmatpush1.bf16.msra.mxu0 %v1100
    %1639 = vmatprep.subr.bf16.mxu0 0
    %1640 = vmatpush1.bf16.msra.mxu0 %v1103
    %1641 = vmatprep.subr.bf16.mxu0 0
    %1642 = vmatpush1.bf16.msra.mxu0 %v1106
    %1643 = vmatprep.subr.bf16.mxu0 0
    %1644 = vmatpush1.bf16.msra.mxu0 %v1109
    %1645 = vmatprep.subr.bf16.mxu0 0
    %1646 = vmatpush1.bf16.msra.mxu0 %v1112
    %1647 = vmatprep.subr.bf16.mxu0 0
    %1648 = vmatpush1.bf16.msra.mxu0 %v1115
    %1649 = vmatprep.subr.bf16.mxu0 0
    %1650 = vmatpush1.bf16.msra.mxu0 %v1118
    %1651 = vmatprep.subr.bf16.mxu0 0
    %1652 = vmatpush1.bf16.msra.mxu0 %v1121
    %1653 = vmatprep.subr.bf16.mxu0 0
    %1654 = vmatpush1.bf16.msra.mxu0 %v1124
    %1655 = vmatprep.subr.bf16.mxu0 0
    %1656 = vmatpush1.bf16.msra.mxu0 %v1127
    %1657 = vmatprep.subr.bf16.mxu0 0
    %1658 = vmatpush1.bf16.msra.mxu0 %v1130
    %1659 = vmatprep.subr.bf16.mxu0 0
    %1660 = vmatpush1.bf16.msra.mxu0 %v1133
    %1661 = vmatprep.subr.bf16.mxu0 0
    %1662 = vmatpush1.bf16.msra.mxu0 %v1136
    %1663 = vmatprep.subr.bf16.mxu0 0
    %1664 = vmatpush1.bf16.msra.mxu0 %v1139
    %1665 = vmatprep.subr.bf16.mxu0 0
    %1666 = vmatpush1.bf16.msra.mxu0 %v1142
    %1667 = vmatprep.mubr.bf16.mxu0 %v394
    %1668 = vmatmul.mubr.bf16.gmra.mrb[0].mxu0 %v393
    %v1669 = vpop.f32.mrb[0].mxu0
    %v1670 = vadd.f32 %v1630, %v1669
    %v1671 = vpop.f32.mrb[0].mxu0
    %v1672 = vpop.f32.mrb[0].mxu0
    %v1673 = vpop.f32.mrb[0].mxu0
    %1674 = vdwg.mxu0
    %1675 = vmatprep.subr.bf16.mxu0 0
    %1676 = vmatpush1.bf16.msra.mxu0 %v1145
    %1677 = vmatprep.subr.bf16.mxu0 0
    %1678 = vmatpush1.bf16.msra.mxu0 %v1148
    %1679 = vmatprep.subr.bf16.mxu0 0
    %1680 = vmatpush1.bf16.msra.mxu0 %v1151
    %1681 = vmatprep.subr.bf16.mxu0 0
    %1682 = vmatpush1.bf16.msra.mxu0 %v1154
    %1683 = vmatprep.subr.bf16.mxu0 0
    %1684 = vmatpush1.bf16.msra.mxu0 %v1157
    %1685 = vmatprep.subr.bf16.mxu0 0
    %1686 = vmatpush1.bf16.msra.mxu0 %v1160
    %1687 = vmatprep.subr.bf16.mxu0 0
    %1688 = vmatpush1.bf16.msra.mxu0 %v1163
    %1689 = vmatprep.subr.bf16.mxu0 0
    %1690 = vmatpush1.bf16.msra.mxu0 %v1166
    %1691 = vmatprep.subr.bf16.mxu0 0
    %1692 = vmatpush1.bf16.msra.mxu0 %v1169
    %1693 = vmatprep.subr.bf16.mxu0 0
    %1694 = vmatpush1.bf16.msra.mxu0 %v1172
    %1695 = vmatprep.subr.bf16.mxu0 0
    %1696 = vmatpush1.bf16.msra.mxu0 %v1175
    %1697 = vmatprep.subr.bf16.mxu0 0
    %1698 = vmatpush1.bf16.msra.mxu0 %v1178
    %1699 = vmatprep.subr.bf16.mxu0 0
    %1700 = vmatpush1.bf16.msra.mxu0 %v1181
    %1701 = vmatprep.subr.bf16.mxu0 0
    %1702 = vmatpush1.bf16.msra.mxu0 %v1184
    %1703 = vmatprep.subr.bf16.mxu0 0
    %1704 = vmatpush1.bf16.msra.mxu0 %v1187
    %1705 = vmatprep.subr.bf16.mxu0 0
    %1706 = vmatpush1.bf16.msra.mxu0 %v1190
    %1707 = vmatprep.mubr.bf16.mxu0 %v396
    %1708 = vmatmul.mubr.bf16.gmra.mrb[0].mxu0 %v395
    %v1709 = vpop.f32.mrb[0].mxu0
    %v1710 = vadd.f32 %v1670, %v1709
    %v1711 = vpop.f32.mrb[0].mxu0
    %v1712 = vpop.f32.mrb[0].mxu0
    %v1713 = vpop.f32.mrb[0].mxu0
    %1714 = vdwg.mxu0
    %1715 = vmatprep.subr.bf16.mxu0 0
    %1716 = vmatpush1.bf16.msra.mxu0 %v1193
    %1717 = vmatprep.subr.bf16.mxu0 0
    %1718 = vmatpush1.bf16.msra.mxu0 %v1196
    %1719 = vmatprep.subr.bf16.mxu0 0
    %1720 = vmatpush1.bf16.msra.mxu0 %v1199
    %1721 = vmatprep.subr.bf16.mxu0 0
    %1722 = vmatpush1.bf16.msra.mxu0 %v1202
    %1723 = vmatprep.subr.bf16.mxu0 0
    %1724 = vmatpush1.bf16.msra.mxu0 %v1205
    %1725 = vmatprep.subr.bf16.mxu0 0
    %1726 = vmatpush1.bf16.msra.mxu0 %v1208
    %1727 = vmatprep.subr.bf16.mxu0 0
    %1728 = vmatpush1.bf16.msra.mxu0 %v1211
    %1729 = vmatprep.subr.bf16.mxu0 0
    %1730 = vmatpush1.bf16.msra.mxu0 %v1214
    %1731 = vmatprep.subr.bf16.mxu0 0
    %1732 = vmatpush1.bf16.msra.mxu0 %v1217
    %1733 = vmatprep.subr.bf16.mxu0 0
    %1734 = vmatpush1.bf16.msra.mxu0 %v1220
    %1735 = vmatprep.subr.bf16.mxu0 0
    %1736 = vmatpush1.bf16.msra.mxu0 %v1223
    %1737 = vmatprep.subr.bf16.mxu0 0
    %1738 = vmatpush1.bf16.msra.mxu0 %v1226
    %1739 = vmatprep.subr.bf16.mxu0 0
    %1740 = vmatpush1.bf16.msra.mxu0 %v1229
    %1741 = vmatprep.subr.bf16.mxu0 0
    %1742 = vmatpush1.bf16.msra.mxu0 %v1232
    %1743 = vmatprep.subr.bf16.mxu0 0
    %1744 = vmatpush1.bf16.msra.mxu0 %v1235
    %1745 = vmatprep.subr.bf16.mxu0 0
    %1746 = vmatpush1.bf16.msra.mxu0 %v1238
    %1747 = vmatprep.mubr.bf16.mxu0 %v398
    %1748 = vmatmul.mubr.bf16.gmra.mrb[0].mxu0 %v397
    %v1749 = vpop.f32.mrb[0].mxu0
    %v1750 = vadd.f32 %v1710, %v1749
    %v1751 = vpop.f32.mrb[0].mxu0
    %v1752 = vpop.f32.mrb[0].mxu0
    %v1753 = vpop.f32.mrb[0].mxu0
    %1754 = vdwg.mxu0
    %v1755 = vmax.f32 %v1591, 0.0
    %vm1756 = vcmp.ne.f32.partialorder %v1591, %v1591
    %v1757 = vadd.f32 %v1591, 0.0
    %v1758 = vand.u32 2147483647, %v1591
    %v1759 = vsub.f32 0.0, %v1758
    %v1760 = vmul.f32 %v1759, 1.442695
    %v1761 = vpow.pop %v1760
    %v1762 = vadd.f32 %v1761, 1.0
    %v1763 = vlog2.pop %v1762
    %v1764 = vmul.f32 %v1763, 0.6931472
    %v1765 = vmul.f32 -0.5, %v1761
    %v1766 = vadd.f32 %v1765, 1.0
    %v1767 = vmul.f32 %v1766, %v1761
    %v1768 = vand.u32 2147483647, %v1761
    %vm1769 = vcmp.lt.f32.partialorder %v1768, 0.0004427343
    %v1770 = vsel %vm1769, %v1767, %v1764
    %v1771 = vadd.f32 %v1755, %v1770
    %v1772 = vsel %vm1756, %v1757, %v1771
    %v1773 = vld [vmem:[#allocation5] sm:$0xf]
    %v1774 = vunpack.c.l.bf16 %v1773
    %v1775 = vmul.f32 %v1774, %v1772
    %v1776 = vadd.f32 %v1775, %v1589
    %v1777 = vpack.c.bf16 %v1776, %v1776
    %v1778 = vld [vmem:[#allocation10] sm:$0xff]
    %v1779 = vld [vmem:[#allocation10 + $0x8] sm:$0xff]
    %v1780 = vld [vmem:[#allocation10 + $0x10] sm:$0xff]
    %v1781 = vld [vmem:[#allocation10 + $0x18] sm:$0xff]
    %v1782 = vld [vmem:[#allocation10 + $0x20] sm:$0xf]
    %v1783 = vld [vmem:[#allocation10 + $0x24] sm:$0xff]
    %v1784 = vld [vmem:[#allocation10 + $0x2c] sm:$0xff]
    %v1785 = vld [vmem:[#allocation10 + $0x34] sm:$0xff]
    %v1786 = vld [vmem:[#allocation10 + $0x3c] sm:$0xff]
    %v1787 = vld [vmem:[#allocation10 + $0x44] sm:$0xf]
    %v1788 = vld [vmem:[#allocation10 + $0x48] sm:$0xff]
    %v1789 = vld [vmem:[#allocation10 + $0x50] sm:$0xff]
    %v1790 = vld [vmem:[#allocation10 + $0x58] sm:$0xff]
    %v1791 = vld [vmem:[#allocation10 + $0x60] sm:$0xff]
    %v1792 = vld [vmem:[#allocation10 + $0x68] sm:$0xf]
    %v1793 = vld [vmem:[#allocation10 + $0x6c] sm:$0xff]
    %v1794 = vld [vmem:[#allocation10 + $0x74] sm:$0xff]
    %v1795 = vld [vmem:[#allocation10 + $0x7c] sm:$0xff]
    %v1796 = vld [vmem:[#allocation10 + $0x84] sm:$0xff]
    %v1797 = vld [vmem:[#allocation10 + $0x8c] sm:$0xf]
    %v1798 = vld [vmem:[#allocation10 + $0x90] sm:$0xff]
    %v1799 = vld [vmem:[#allocation10 + $0x98] sm:$0xff]
    %v1800 = vld [vmem:[#allocation10 + $0xa0] sm:$0xff]
    %v1801 = vld [vmem:[#allocation10 + $0xa8] sm:$0xff]
    %v1802 = vld [vmem:[#allocation10 + $0xb0] sm:$0xf]
    %v1803 = vld [vmem:[#allocation10 + $0xb4] sm:$0xff]
    %v1804 = vld [vmem:[#allocation10 + $0xbc] sm:$0xff]
    %v1805 = vld [vmem:[#allocation10 + $0xc4] sm:$0xff]
    %v1806 = vld [vmem:[#allocation10 + $0xcc] sm:$0xff]
    %v1807 = vld [vmem:[#allocation10 + $0xd4] sm:$0xf]
    %v1808 = vld [vmem:[#allocation10 + $0xd8] sm:$0xff]
    %v1809 = vld [vmem:[#allocation10 + $0xe0] sm:$0xff]
    %v1810 = vld [vmem:[#allocation10 + $0xe8] sm:$0xff]
    %v1811 = vld [vmem:[#allocation10 + $0xf0] sm:$0xff]
    %v1812 = vld [vmem:[#allocation10 + $0xf8] sm:$0xf]
    %v1813 = vld [vmem:[#allocation10 + $0xfc] sm:$0xff]
    %v1814 = vld [vmem:[#allocation10 + $0x104] sm:$0xff]
    %v1815 = vld [vmem:[#allocation10 + $0x10c] sm:$0xff]
    %v1816 = vld [vmem:[#allocation10 + $0x114] sm:$0xff]
    %v1817 = vld [vmem:[#allocation10 + $0x11c] sm:$0xf]
    %v1818 = vld [vmem:[#allocation10 + $0x120] sm:$0xff]
    %v1819 = vld [vmem:[#allocation10 + $0x128] sm:$0xff]
    %v1820 = vld [vmem:[#allocation10 + $0x130] sm:$0xff]
    %v1821 = vld [vmem:[#allocation10 + $0x138] sm:$0xff]
    %v1822 = vld [vmem:[#allocation10 + $0x140] sm:$0xf]
    %v1823 = vld [vmem:[#allocation10 + $0x144] sm:$0xff]
    %v1824 = vld [vmem:[#allocation10 + $0x14c] sm:$0xff]
    %v1825 = vld [vmem:[#allocation10 + $0x154] sm:$0xff]
    %v1826 = vld [vmem:[#allocation10 + $0x15c] sm:$0xff]
    %v1827 = vld [vmem:[#allocation10 + $0x164] sm:$0xf]
    %v1828 = vld [vmem:[#allocation10 + $0x168] sm:$0xff]
    %v1829 = vld [vmem:[#allocation10 + $0x170] sm:$0xff]
    %v1830 = vld [vmem:[#allocation10 + $0x178] sm:$0xff]
    %v1831 = vld [vmem:[#allocation10 + $0x180] sm:$0xff]
    %v1832 = vld [vmem:[#allocation10 + $0x188] sm:$0xf]
    %v1833 = vld [vmem:[#allocation10 + $0x18c] sm:$0xff]
    %v1834 = vld [vmem:[#allocation10 + $0x194] sm:$0xff]
    %v1835 = vld [vmem:[#allocation10 + $0x19c] sm:$0xff]
    %v1836 = vld [vmem:[#allocation10 + $0x1a4] sm:$0xff]
    %v1837 = vld [vmem:[#allocation10 + $0x1ac] sm:$0xf]
    %v1838 = vld [vmem:[#allocation10 + $0x1b0] sm:$0xff]
    %v1839 = vld [vmem:[#allocation10 + $0x1b8] sm:$0xff]
    %v1840 = vld [vmem:[#allocation10 + $0x1c0] sm:$0xff]
    %v1841 = vld [vmem:[#allocation10 + $0x1c8] sm:$0xff]
    %v1842 = vld [vmem:[#allocation10 + $0x1d0] sm:$0xf]
    %v1843 = vld [vmem:[#allocation10 + $0x1d4] sm:$0xff]
    %v1844 = vld [vmem:[#allocation10 + $0x1dc] sm:$0xff]
    %v1845 = vld [vmem:[#allocation10 + $0x1e4] sm:$0xff]
    %v1846 = vld [vmem:[#allocation10 + $0x1ec] sm:$0xff]
    %v1847 = vld [vmem:[#allocation10 + $0x1f4] sm:$0xf]
    %v1848 = vld [vmem:[#allocation10 + $0x1f8] sm:$0xff]
    %v1849 = vld [vmem:[#allocation10 + $0x200] sm:$0xff]
    %v1850 = vld [vmem:[#allocation10 + $0x208] sm:$0xff]
    %v1851 = vld [vmem:[#allocation10 + $0x210] sm:$0xff]
    %v1852 = vld [vmem:[#allocation10 + $0x218] sm:$0xf]
    %v1853 = vld [vmem:[#allocation10 + $0x21c] sm:$0xff]
    %v1854 = vld [vmem:[#allocation10 + $0x224] sm:$0xff]
    %v1855 = vld [vmem:[#allocation10 + $0x22c] sm:$0xff]
    %v1856 = vld [vmem:[#allocation10 + $0x234] sm:$0xff]
    %v1857 = vld [vmem:[#allocation10 + $0x23c] sm:$0xf]
    %v1858 = vld [vmem:[#allocation11] sm:$0xff]
    %v1859 = vld [vmem:[#allocation11 + $0x8] sm:$0x1]
    %v1862 = vlaneseq
    %v1863 = vshrl.u32 %v1862, 7
    %v1864 = vsub.s32 0, %v1863
    %v1865 = vrot.slane %v1858, %v1864
    %v1866 = vlaneseq
    %v1867 = vshrl.u32 %v1866, 7
    %v1868 = vsub.s32 1, %v1867
    %v1869 = vrot.slane %v1858, %v1868
    %v1870 = vlaneseq
    %v1871 = vshrl.u32 %v1870, 7
    %v1872 = vsub.s32 2, %v1871
    %v1873 = vrot.slane %v1858, %v1872
    %v1874 = vlaneseq
    %v1875 = vshrl.u32 %v1874, 7
    %v1876 = vsub.s32 3, %v1875
    %v1877 = vrot.slane %v1858, %v1876
    %v1878 = vlaneseq
    %v1879 = vshrl.u32 %v1878, 7
    %v1880 = vsub.s32 4, %v1879
    %v1881 = vrot.slane %v1858, %v1880
    %v1882 = vlaneseq
    %v1883 = vshrl.u32 %v1882, 7
    %v1884 = vsub.s32 5, %v1883
    %v1885 = vrot.slane %v1858, %v1884
    %v1886 = vlaneseq
    %v1887 = vshrl.u32 %v1886, 7
    %v1888 = vsub.s32 6, %v1887
    %v1889 = vrot.slane %v1858, %v1888
    %v1890 = vlaneseq
    %v1891 = vshrl.u32 %v1890, 7
    %v1892 = vsub.s32 7, %v1891
    %v1893 = vrot.slane %v1858, %v1892
    %v1894 = vlaneseq
    %v1895 = vshrl.u32 %v1894, 7
    %v1896 = vsub.s32 0, %v1895
    %v1897 = vrot.slane %v1859, %v1896
    %v1987 = vunpack.c.l.b16 %v1778
    %v1988 = vunpack.c.h.b16 %v1778
    %v1989 = vunpack.c.l.b16 %v1779
    %v1990 = vunpack.c.h.b16 %v1779
    %v1991 = vunpack.c.l.b16 %v1780
    %v1992 = vunpack.c.h.b16 %v1780
    %v1993 = vunpack.c.l.b16 %v1781
    %v1994 = vunpack.c.h.b16 %v1781
    %v1995 = vunpack.c.l.b16 %v1782
    %v1996 = vunpack.c.l.b16 %v1783
    %v1997 = vunpack.c.h.b16 %v1783
    %v1998 = vunpack.c.l.b16 %v1784
    %v1999 = vunpack.c.h.b16 %v1784
    %v2000 = vunpack.c.l.b16 %v1785
    %v2001 = vunpack.c.h.b16 %v1785
    %v2002 = vunpack.c.l.b16 %v1786
    %v2003 = vunpack.c.h.b16 %v1786
    %v2004 = vunpack.c.l.b16 %v1787
    %v2005 = vunpack.c.l.b16 %v1788
    %v2006 = vunpack.c.h.b16 %v1788
    %v2007 = vunpack.c.l.b16 %v1789
    %v2008 = vunpack.c.h.b16 %v1789
    %v2009 = vunpack.c.l.b16 %v1790
    %v2010 = vunpack.c.h.b16 %v1790
    %v2011 = vunpack.c.l.b16 %v1791
    %v2012 = vunpack.c.h.b16 %v1791
    %v2013 = vunpack.c.l.b16 %v1792
    %v2014 = vunpack.c.l.b16 %v1793
    %v2015 = vunpack.c.h.b16 %v1793
    %v2016 = vunpack.c.l.b16 %v1794
    %v2017 = vunpack.c.h.b16 %v1794
    %v2018 = vunpack.c.l.b16 %v1795
    %v2019 = vunpack.c.h.b16 %v1795
    %v2020 = vunpack.c.l.b16 %v1796
    %v2021 = vunpack.c.h.b16 %v1796
    %v2022 = vunpack.c.l.b16 %v1797
    %v2023 = vunpack.c.l.b16 %v1798
    %v2024 = vunpack.c.h.b16 %v1798
    %v2025 = vunpack.c.l.b16 %v1799
    %v2026 = vunpack.c.h.b16 %v1799
    %v2027 = vunpack.c.l.b16 %v1800
    %v2028 = vunpack.c.h.b16 %v1800
    %v2029 = vunpack.c.l.b16 %v1801
    %v2030 = vunpack.c.h.b16 %v1801
    %v2031 = vunpack.c.l.b16 %v1802
    %v2032 = vunpack.c.l.b16 %v1803
    %v2033 = vunpack.c.h.b16 %v1803
    %v2034 = vunpack.c.l.b16 %v1804
    %v2035 = vunpack.c.h.b16 %v1804
    %v2036 = vunpack.c.l.b16 %v1805
    %v2037 = vunpack.c.h.b16 %v1805
    %v2038 = vunpack.c.l.b16 %v1806
    %v2039 = vunpack.c.h.b16 %v1806
    %v2040 = vunpack.c.l.b16 %v1807
    %v2041 = vunpack.c.l.b16 %v1808
    %v2042 = vunpack.c.h.b16 %v1808
    %v2043 = vunpack.c.l.b16 %v1809
    %v2044 = vunpack.c.h.b16 %v1809
    %v2045 = vunpack.c.l.b16 %v1810
    %v2046 = vunpack.c.h.b16 %v1810
    %v2047 = vunpack.c.l.b16 %v1811
    %v2048 = vunpack.c.h.b16 %v1811
    %v2049 = vunpack.c.l.b16 %v1812
    %v2050 = vunpack.c.l.b16 %v1813
    %v2051 = vunpack.c.h.b16 %v1813
    %v2052 = vunpack.c.l.b16 %v1814
    %v2053 = vunpack.c.h.b16 %v1814
    %v2054 = vunpack.c.l.b16 %v1815
    %v2055 = vunpack.c.h.b16 %v1815
    %v2056 = vunpack.c.l.b16 %v1816
    %v2057 = vunpack.c.h.b16 %v1816
    %v2058 = vunpack.c.l.b16 %v1817
    %v2059 = vunpack.c.l.b16 %v1818
    %v2060 = vunpack.c.h.b16 %v1818
    %v2061 = vunpack.c.l.b16 %v1819
    %v2062 = vunpack.c.h.b16 %v1819
    %v2063 = vunpack.c.l.b16 %v1820
    %v2064 = vunpack.c.h.b16 %v1820
    %v2065 = vunpack.c.l.b16 %v1821
    %v2066 = vunpack.c.h.b16 %v1821
    %v2067 = vunpack.c.l.b16 %v1822
    %v2068 = vunpack.c.l.b16 %v1823
    %v2069 = vunpack.c.h.b16 %v1823
    %v2070 = vunpack.c.l.b16 %v1824
    %v2071 = vunpack.c.h.b16 %v1824
    %v2072 = vunpack.c.l.b16 %v1825
    %v2073 = vunpack.c.h.b16 %v1825
    %v2074 = vunpack.c.l.b16 %v1826
    %v2075 = vunpack.c.h.b16 %v1826
    %v2076 = vunpack.c.l.b16 %v1827
    %v2077 = vunpack.c.l.b16 %v1828
    %v2078 = vunpack.c.h.b16 %v1828
    %v2079 = vunpack.c.l.b16 %v1829
    %v2080 = vunpack.c.h.b16 %v1829
    %v2081 = vunpack.c.l.b16 %v1830
    %v2082 = vunpack.c.h.b16 %v1830
    %v2083 = vunpack.c.l.b16 %v1831
    %v2084 = vunpack.c.h.b16 %v1831
    %v2085 = vunpack.c.l.b16 %v1832
    %v2086 = vunpack.c.l.b16 %v1833
    %v2087 = vunpack.c.h.b16 %v1833
    %v2088 = vunpack.c.l.b16 %v1834
    %v2089 = vunpack.c.h.b16 %v1834
    %v2090 = vunpack.c.l.b16 %v1835
    %v2091 = vunpack.c.h.b16 %v1835
    %v2092 = vunpack.c.l.b16 %v1836
    %v2093 = vunpack.c.h.b16 %v1836
    %v2094 = vunpack.c.l.b16 %v1837
    %v2095 = vunpack.c.l.b16 %v1838
    %v2096 = vunpack.c.h.b16 %v1838
    %v2097 = vunpack.c.l.b16 %v1839
    %v2098 = vunpack.c.h.b16 %v1839
    %v2099 = vunpack.c.l.b16 %v1840
    %v2100 = vunpack.c.h.b16 %v1840
    %v2101 = vunpack.c.l.b16 %v1841
    %v2102 = vunpack.c.h.b16 %v1841
    %v2103 = vunpack.c.l.b16 %v1842
    %v2104 = vunpack.c.l.b16 %v1843
    %v2105 = vunpack.c.h.b16 %v1843
    %v2106 = vunpack.c.l.b16 %v1844
    %v2107 = vunpack.c.h.b16 %v1844
    %v2108 = vunpack.c.l.b16 %v1845
    %v2109 = vunpack.c.h.b16 %v1845
    %v2110 = vunpack.c.l.b16 %v1846
    %v2111 = vunpack.c.h.b16 %v1846
    %v2112 = vunpack.c.l.b16 %v1847
    %v2113 = vunpack.c.l.b16 %v1848
    %v2114 = vunpack.c.h.b16 %v1848
    %v2115 = vunpack.c.l.b16 %v1849
    %v2116 = vunpack.c.h.b16 %v1849
    %v2117 = vunpack.c.l.b16 %v1850
    %v2118 = vunpack.c.h.b16 %v1850
    %v2119 = vunpack.c.l.b16 %v1851
    %v2120 = vunpack.c.h.b16 %v1851
    %v2121 = vunpack.c.l.b16 %v1852
    %v2122 = vunpack.c.l.b16 %v1853
    %v2123 = vunpack.c.h.b16 %v1853
    %v2124 = vunpack.c.l.b16 %v1854
    %v2125 = vunpack.c.h.b16 %v1854
    %v2126 = vunpack.c.l.b16 %v1855
    %v2127 = vunpack.c.h.b16 %v1855
    %v2128 = vunpack.c.l.b16 %v1856
    %v2129 = vunpack.c.h.b16 %v1856
    %v2130 = vunpack.c.l.b16 %v1857
    %v2131 = vpack.c.b16 %v1996, %v1987
    %v2132 = vpack.c.b16 %v1997, %v1988
    %v2133 = vpack.c.b16 %v1998, %v1989
    %v2134 = vpack.c.b16 %v1999, %v1990
    %v2135 = vpack.c.b16 %v2000, %v1991
    %v2136 = vpack.c.b16 %v2001, %v1992
    %v2137 = vpack.c.b16 %v2002, %v1993
    %v2138 = vpack.c.b16 %v2003, %v1994
    %v2139 = vpack.c.b16 %v2004, %v1995
    %v2140 = vpack.c.b16 %v2014, %v2005
    %v2141 = vpack.c.b16 %v2015, %v2006
    %v2142 = vpack.c.b16 %v2016, %v2007
    %v2143 = vpack.c.b16 %v2017, %v2008
    %v2144 = vpack.c.b16 %v2018, %v2009
    %v2145 = vpack.c.b16 %v2019, %v2010
    %v2146 = vpack.c.b16 %v2020, %v2011
    %v2147 = vpack.c.b16 %v2021, %v2012
    %v2148 = vpack.c.b16 %v2022, %v2013
    %v2149 = vpack.c.b16 %v2032, %v2023
    %v2150 = vpack.c.b16 %v2033, %v2024
    %v2151 = vpack.c.b16 %v2034, %v2025
    %v2152 = vpack.c.b16 %v2035, %v2026
    %v2153 = vpack.c.b16 %v2036, %v2027
    %v2154 = vpack.c.b16 %v2037, %v2028
    %v2155 = vpack.c.b16 %v2038, %v2029
    %v2156 = vpack.c.b16 %v2039, %v2030
    %v2157 = vpack.c.b16 %v2040, %v2031
    %v2158 = vpack.c.b16 %v2050, %v2041
    %v2159 = vpack.c.b16 %v2051, %v2042
    %v2160 = vpack.c.b16 %v2052, %v2043
    %v2161 = vpack.c.b16 %v2053, %v2044
    %v2162 = vpack.c.b16 %v2054, %v2045
    %v2163 = vpack.c.b16 %v2055, %v2046
    %v2164 = vpack.c.b16 %v2056, %v2047
    %v2165 = vpack.c.b16 %v2057, %v2048
    %v2166 = vpack.c.b16 %v2058, %v2049
    %v2167 = vpack.c.b16 %v2068, %v2059
    %v2168 = vpack.c.b16 %v2069, %v2060
    %v2169 = vpack.c.b16 %v2070, %v2061
    %v2170 = vpack.c.b16 %v2071, %v2062
    %v2171 = vpack.c.b16 %v2072, %v2063
    %v2172 = vpack.c.b16 %v2073, %v2064
    %v2173 = vpack.c.b16 %v2074, %v2065
    %v2174 = vpack.c.b16 %v2075, %v2066
    %v2175 = vpack.c.b16 %v2076, %v2067
    %v2176 = vpack.c.b16 %v2086, %v2077
    %v2177 = vpack.c.b16 %v2087, %v2078
    %v2178 = vpack.c.b16 %v2088, %v2079
    %v2179 = vpack.c.b16 %v2089, %v2080
    %v2180 = vpack.c.b16 %v2090, %v2081
    %v2181 = vpack.c.b16 %v2091, %v2082
    %v2182 = vpack.c.b16 %v2092, %v2083
    %v2183 = vpack.c.b16 %v2093, %v2084
    %v2184 = vpack.c.b16 %v2094, %v2085
    %v2185 = vpack.c.b16 %v2104, %v2095
    %v2186 = vpack.c.b16 %v2105, %v2096
    %v2187 = vpack.c.b16 %v2106, %v2097
    %v2188 = vpack.c.b16 %v2107, %v2098
    %v2189 = vpack.c.b16 %v2108, %v2099
    %v2190 = vpack.c.b16 %v2109, %v2100
    %v2191 = vpack.c.b16 %v2110, %v2101
    %v2192 = vpack.c.b16 %v2111, %v2102
    %v2193 = vpack.c.b16 %v2112, %v2103
    %v2194 = vpack.c.b16 %v2122, %v2113
    %v2195 = vpack.c.b16 %v2123, %v2114
    %v2196 = vpack.c.b16 %v2124, %v2115
    %v2197 = vpack.c.b16 %v2125, %v2116
    %v2198 = vpack.c.b16 %v2126, %v2117
    %v2199 = vpack.c.b16 %v2127, %v2118
    %v2200 = vpack.c.b16 %v2128, %v2119
    %v2201 = vpack.c.b16 %v2129, %v2120
    %v2202 = vpack.c.b16 %v2130, %v2121
    %2275 = vmatprep.subr.bf16.mxu0 %v2132
    %2276 = vmatpush1.bf16.msra.mxu0 %v2131
    %2277 = vmatprep.subr.bf16.mxu0 %v2141
    %2278 = vmatpush1.bf16.msra.mxu0 %v2140
    %2279 = vmatprep.subr.bf16.mxu0 %v2150
    %2280 = vmatpush1.bf16.msra.mxu0 %v2149
    %2281 = vmatprep.subr.bf16.mxu0 %v2159
    %2282 = vmatpush1.bf16.msra.mxu0 %v2158
    %2283 = vmatprep.subr.bf16.mxu0 %v2168
    %2284 = vmatpush1.bf16.msra.mxu0 %v2167
    %2285 = vmatprep.subr.bf16.mxu0 %v2177
    %2286 = vmatpush1.bf16.msra.mxu0 %v2176
    %2287 = vmatprep.subr.bf16.mxu0 %v2186
    %2288 = vmatpush1.bf16.msra.mxu0 %v2185
    %2289 = vmatprep.subr.bf16.mxu0 %v2195
    %2290 = vmatpush1.bf16.msra.mxu0 %v2194
    %2291 = vmatprep.subr.bf16.mxu0 0
    %2292 = vmatpush1.bf16.msra.mxu0 0
    %2293 = vmatprep.subr.bf16.mxu0 0
    %2294 = vmatpush1.bf16.msra.mxu0 0
    %2295 = vmatprep.subr.bf16.mxu0 0
    %2296 = vmatpush1.bf16.msra.mxu0 0
    %2297 = vmatprep.subr.bf16.mxu0 0
    %2298 = vmatpush1.bf16.msra.mxu0 0
    %2299 = vmatprep.subr.bf16.mxu0 0
    %2300 = vmatpush1.bf16.msra.mxu0 0
    %2301 = vmatprep.subr.bf16.mxu0 0
    %2302 = vmatpush1.bf16.msra.mxu0 0
    %2303 = vmatprep.subr.bf16.mxu0 0
    %2304 = vmatpush1.bf16.msra.mxu0 0
    %2305 = vmatprep.subr.bf16.mxu0 0
    %2306 = vmatpush1.bf16.msra.mxu0 0
    %2307 = vmatprep.mubr.bf16.mxu0 0
    %2308 = vmatmul.mubr.bf16.gmra.mrb[0].mxu0 %v1777
    %v2309 = vpop.f32.mrb[0].mxu0
    %v2310 = vadd.f32 %v1865, %v2309
    %v2311 = vpop.f32.mrb[0].mxu0
    %v2312 = vadd.f32 %v1869, %v2311
    %v2313 = vpop.f32.mrb[0].mxu0
    %v2314 = vpop.f32.mrb[0].mxu0
    %2315 = vdwg.mxu0
    %2316 = vmatprep.subr.bf16.mxu0 %v2134
    %2317 = vmatpush1.bf16.msra.mxu0 %v2133
    %2318 = vmatprep.subr.bf16.mxu0 %v2143
    %2319 = vmatpush1.bf16.msra.mxu0 %v2142
    %2320 = vmatprep.subr.bf16.mxu0 %v2152
    %2321 = vmatpush1.bf16.msra.mxu0 %v2151
    %2322 = vmatprep.subr.bf16.mxu0 %v2161
    %2323 = vmatpush1.bf16.msra.mxu0 %v2160
    %2324 = vmatprep.subr.bf16.mxu0 %v2170
    %2325 = vmatpush1.bf16.msra.mxu0 %v2169
    %2326 = vmatprep.subr.bf16.mxu0 %v2179
    %2327 = vmatpush1.bf16.msra.mxu0 %v2178
    %2328 = vmatprep.subr.bf16.mxu0 %v2188
    %2329 = vmatpush1.bf16.msra.mxu0 %v2187
    %2330 = vmatprep.subr.bf16.mxu0 %v2197
    %2331 = vmatpush1.bf16.msra.mxu0 %v2196
    %2332 = vmatprep.subr.bf16.mxu0 0
    %2333 = vmatpush1.bf16.msra.mxu0 0
    %2334 = vmatprep.subr.bf16.mxu0 0
    %2335 = vmatpush1.bf16.msra.mxu0 0
    %2336 = vmatprep.subr.bf16.mxu0 0
    %2337 = vmatpush1.bf16.msra.mxu0 0
    %2338 = vmatprep.subr.bf16.mxu0 0
    %2339 = vmatpush1.bf16.msra.mxu0 0
    %2340 = vmatprep.subr.bf16.mxu0 0
    %2341 = vmatpush1.bf16.msra.mxu0 0
    %2342 = vmatprep.subr.bf16.mxu0 0
    %2343 = vmatpush1.bf16.msra.mxu0 0
    %2344 = vmatprep.subr.bf16.mxu0 0
    %2345 = vmatpush1.bf16.msra.mxu0 0
    %2346 = vmatprep.subr.bf16.mxu0 0
    %2347 = vmatpush1.bf16.msra.mxu0 0
    %2348 = vmatprep.mubr.bf16.mxu0 0
    %2349 = vmatmul.mubr.bf16.gmra.mrb[0].mxu0 %v1777
    %v2350 = vpop.f32.mrb[0].mxu0
    %v2351 = vadd.f32 %v1873, %v2350
    %v2352 = vpop.f32.mrb[0].mxu0
    %v2353 = vadd.f32 %v1877, %v2352
    %v2354 = vpop.f32.mrb[0].mxu0
    %v2355 = vpop.f32.mrb[0].mxu0
    %2356 = vdwg.mxu0
    %2357 = vmatprep.subr.bf16.mxu0 %v2136
    %2358 = vmatpush1.bf16.msra.mxu0 %v2135
    %2359 = vmatprep.subr.bf16.mxu0 %v2145
    %2360 = vmatpush1.bf16.msra.mxu0 %v2144
    %2361 = vmatprep.subr.bf16.mxu0 %v2154
    %2362 = vmatpush1.bf16.msra.mxu0 %v2153
    %2363 = vmatprep.subr.bf16.mxu0 %v2163
    %2364 = vmatpush1.bf16.msra.mxu0 %v2162
    %2365 = vmatprep.subr.bf16.mxu0 %v2172
    %2366 = vmatpush1.bf16.msra.mxu0 %v2171
    %2367 = vmatprep.subr.bf16.mxu0 %v2181
    %2368 = vmatpush1.bf16.msra.mxu0 %v2180
    %2369 = vmatprep.subr.bf16.mxu0 %v2190
    %2370 = vmatpush1.bf16.msra.mxu0 %v2189
    %2371 = vmatprep.subr.bf16.mxu0 %v2199
    %2372 = vmatpush1.bf16.msra.mxu0 %v2198
    %2373 = vmatprep.subr.bf16.mxu0 0
    %2374 = vmatpush1.bf16.msra.mxu0 0
    %2375 = vmatprep.subr.bf16.mxu0 0
    %2376 = vmatpush1.bf16.msra.mxu0 0
    %2377 = vmatprep.subr.bf16.mxu0 0
    %2378 = vmatpush1.bf16.msra.mxu0 0
    %2379 = vmatprep.subr.bf16.mxu0 0
    %2380 = vmatpush1.bf16.msra.mxu0 0
    %2381 = vmatprep.subr.bf16.mxu0 0
    %2382 = vmatpush1.bf16.msra.mxu0 0
    %2383 = vmatprep.subr.bf16.mxu0 0
    %2384 = vmatpush1.bf16.msra.mxu0 0
    %2385 = vmatprep.subr.bf16.mxu0 0
    %2386 = vmatpush1.bf16.msra.mxu0 0
    %2387 = vmatprep.subr.bf16.mxu0 0
    %2388 = vmatpush1.bf16.msra.mxu0 0
    %2389 = vmatprep.mubr.bf16.mxu0 0
    %2390 = vmatmul.mubr.bf16.gmra.mrb[0].mxu0 %v1777
    %v2391 = vpop.f32.mrb[0].mxu0
    %v2392 = vadd.f32 %v1881, %v2391
    %v2393 = vpop.f32.mrb[0].mxu0
    %v2394 = vadd.f32 %v1885, %v2393
    %v2395 = vpop.f32.mrb[0].mxu0
    %v2396 = vpop.f32.mrb[0].mxu0
    %2397 = vdwg.mxu0
    %2398 = vmatprep.subr.bf16.mxu0 %v2138
    %2399 = vmatpush1.bf16.msra.mxu0 %v2137
    %2400 = vmatprep.subr.bf16.mxu0 %v2147
    %2401 = vmatpush1.bf16.msra.mxu0 %v2146
    %2402 = vmatprep.subr.bf16.mxu0 %v2156
    %2403 = vmatpush1.bf16.msra.mxu0 %v2155
    %2404 = vmatprep.subr.bf16.mxu0 %v2165
    %2405 = vmatpush1.bf16.msra.mxu0 %v2164
    %2406 = vmatprep.subr.bf16.mxu0 %v2174
    %2407 = vmatpush1.bf16.msra.mxu0 %v2173
    %2408 = vmatprep.subr.bf16.mxu0 %v2183
    %2409 = vmatpush1.bf16.msra.mxu0 %v2182
    %2410 = vmatprep.subr.bf16.mxu0 %v2192
    %2411 = vmatpush1.bf16.msra.mxu0 %v2191
    %2412 = vmatprep.subr.bf16.mxu0 %v2201
    %2413 = vmatpush1.bf16.msra.mxu0 %v2200
    %2414 = vmatprep.subr.bf16.mxu0 0
    %2415 = vmatpush1.bf16.msra.mxu0 0
    %2416 = vmatprep.subr.bf16.mxu0 0
    %2417 = vmatpush1.bf16.msra.mxu0 0
    %2418 = vmatprep.subr.bf16.mxu0 0
    %2419 = vmatpush1.bf16.msra.mxu0 0
    %2420 = vmatprep.subr.bf16.mxu0 0
    %2421 = vmatpush1.bf16.msra.mxu0 0
    %2422 = vmatprep.subr.bf16.mxu0 0
    %2423 = vmatpush1.bf16.msra.mxu0 0
    %2424 = vmatprep.subr.bf16.mxu0 0
    %2425 = vmatpush1.bf16.msra.mxu0 0
    %2426 = vmatprep.subr.bf16.mxu0 0
    %2427 = vmatpush1.bf16.msra.mxu0 0
    %2428 = vmatprep.subr.bf16.mxu0 0
    %2429 = vmatpush1.bf16.msra.mxu0 0
    %2430 = vmatprep.mubr.bf16.mxu0 0
    %2431 = vmatmul.mubr.bf16.gmra.mrb[0].mxu0 %v1777
    %v2432 = vpop.f32.mrb[0].mxu0
    %v2433 = vadd.f32 %v1889, %v2432
    %v2434 = vpop.f32.mrb[0].mxu0
    %v2435 = vadd.f32 %v1893, %v2434
    %v2436 = vpop.f32.mrb[0].mxu0
    %v2437 = vpop.f32.mrb[0].mxu0
    %2438 = vdwg.mxu0
    %2439 = vmatprep.subr.bf16.mxu0 0
    %2440 = vmatpush1.bf16.msra.mxu0 %v2139
    %2441 = vmatprep.subr.bf16.mxu0 0
    %2442 = vmatpush1.bf16.msra.mxu0 %v2148
    %2443 = vmatprep.subr.bf16.mxu0 0
    %2444 = vmatpush1.bf16.msra.mxu0 %v2157
    %2445 = vmatprep.subr.bf16.mxu0 0
    %2446 = vmatpush1.bf16.msra.mxu0 %v2166
    %2447 = vmatprep.subr.bf16.mxu0 0
    %2448 = vmatpush1.bf16.msra.mxu0 %v2175
    %2449 = vmatprep.subr.bf16.mxu0 0
    %2450 = vmatpush1.bf16.msra.mxu0 %v2184
    %2451 = vmatprep.subr.bf16.mxu0 0
    %2452 = vmatpush1.bf16.msra.mxu0 %v2193
    %2453 = vmatprep.subr.bf16.mxu0 0
    %2454 = vmatpush1.bf16.msra.mxu0 %v2202
    %2455 = vmatprep.subr.bf16.mxu0 0
    %2456 = vmatpush1.bf16.msra.mxu0 0
    %2457 = vmatprep.subr.bf16.mxu0 0
    %2458 = vmatpush1.bf16.msra.mxu0 0
    %2459 = vmatprep.subr.bf16.mxu0 0
    %2460 = vmatpush1.bf16.msra.mxu0 0
    %2461 = vmatprep.subr.bf16.mxu0 0
    %2462 = vmatpush1.bf16.msra.mxu0 0
    %2463 = vmatprep.subr.bf16.mxu0 0
    %2464 = vmatpush1.bf16.msra.mxu0 0
    %2465 = vmatprep.subr.bf16.mxu0 0
    %2466 = vmatpush1.bf16.msra.mxu0 0
    %2467 = vmatprep.subr.bf16.mxu0 0
    %2468 = vmatpush1.bf16.msra.mxu0 0
    %2469 = vmatprep.subr.bf16.mxu0 0
    %2470 = vmatpush1.bf16.msra.mxu0 0
    %2471 = vmatprep.mubr.bf16.mxu0 0
    %2472 = vmatmul.mubr.bf16.gmra.mrb[0].mxu0 %v1777
    %v2473 = vpop.f32.mrb[0].mxu0
    %v2474 = vadd.f32 %v1897, %v2473
    %v2475 = vpop.f32.mrb[0].mxu0
    %v2476 = vpop.f32.mrb[0].mxu0
    %v2477 = vpop.f32.mrb[0].mxu0
    %2478 = vdwg.mxu0
    %v2479 = vxor.u32 %v2312, 2147483648
    %v2480 = vxor.u32 %v2351, 2147483648
    %v2481 = vxor.u32 %v2353, 2147483648
    %v2482 = vxor.u32 %v2392, 2147483648
    %v2483 = vxor.u32 %v2394, 2147483648
    %v2484 = vxor.u32 %v2433, 2147483648
    %v2485 = vxor.u32 %v2435, 2147483648
    %v2486 = vxor.u32 %v2474, 2147483648
    %v2487 = vmul.f32 %v2479, 1.442695
    %v2488 = vpow.pop %v2487
    %v2489 = vmul.f32 %v2480, 1.442695
    %v2490 = vpow.pop %v2489
    %v2491 = vmul.f32 %v2481, 1.442695
    %v2492 = vpow.pop %v2491
    %v2493 = vmul.f32 %v2482, 1.442695
    %v2494 = vpow.pop %v2493
    %v2495 = vmul.f32 %v2483, 1.442695
    %v2496 = vpow.pop %v2495
    %v2497 = vmul.f32 %v2484, 1.442695
    %v2498 = vpow.pop %v2497
    %v2499 = vmul.f32 %v2485, 1.442695
    %v2500 = vpow.pop %v2499
    %v2501 = vmul.f32 %v2486, 1.442695
    %v2502 = vpow.pop %v2501
    %v2503 = vadd.f32 %v2488, 1.0
    %v2504 = vadd.f32 %v2490, 1.0
    %v2505 = vadd.f32 %v2492, 1.0
    %v2506 = vadd.f32 %v2494, 1.0
    %v2507 = vadd.f32 %v2496, 1.0
    %v2508 = vadd.f32 %v2498, 1.0
    %v2509 = vadd.f32 %v2500, 1.0
    %v2510 = vadd.f32 %v2502, 1.0
    %v2511 = vrcp.pop %v2503
    %v2512 = vmul.f32 1.0, %v2511
    %v2513 = vrcp.pop %v2504
    %v2514 = vmul.f32 1.0, %v2513
    %v2515 = vrcp.pop %v2505
    %v2516 = vmul.f32 1.0, %v2515
    %v2517 = vrcp.pop %v2506
    %v2518 = vmul.f32 1.0, %v2517
    %v2519 = vrcp.pop %v2507
    %v2520 = vmul.f32 1.0, %v2519
    %v2521 = vrcp.pop %v2508
    %v2522 = vmul.f32 1.0, %v2521
    %v2523 = vrcp.pop %v2509
    %v2524 = vmul.f32 1.0, %v2523
    %v2525 = vrcp.pop %v2510
    %v2526 = vmul.f32 1.0, %v2525
    %v2527 = vlaneseq
    %v2528 = vand.u32 %v2527, 127
    %vm2529 = vcmp.ge.s32.totalorder %v2528, 64
    %vm2530 = vcmp.lt.s32.totalorder %v2528, 96
    %vm2531 = vmand %vm2529, %vm2530
    %v2532 = vmax.f32 %v1750, 0.0
    %vm2533 = vcmp.ne.f32.partialorder %v1750, %v1750
    %v2534 = vadd.f32 %v1750, 0.0
    %v2535 = vand.u32 2147483647, %v1750
    %v2536 = vsub.f32 0.0, %v2535
    %v2537 = vmul.f32 %v2536, 1.442695
    %v2538 = vpow.pop %v2537
    %v2539 = vadd.f32 %v2538, 1.0
    %v2540 = vlog2.pop %v2539
    %v2541 = vmul.f32 %v2540, 0.6931472
    %v2542 = vmul.f32 -0.5, %v2538
    %v2543 = vadd.f32 %v2542, 1.0
    %v2544 = vmul.f32 %v2543, %v2538
    %v2545 = vand.u32 2147483647, %v2538
    %vm2546 = vcmp.lt.f32.partialorder %v2545, 0.0004427343
    %v2547 = vsel %vm2546, %v2544, %v2541
    %v2548 = vadd.f32 %v2532, %v2547
    %v2549 = vsel %vm2533, %v2534, %v2548
    %v2550 = vlog2.pop %v2549
    %v2551 = vmul.f32 %v2550, 0.6931472
    %v2552 = vmul.f32 %v2551, 2.0
    %v2553 = vsel %vm2531, %v2552, %v1750
    %v2554 = vadd.f32 %v1776, %v2553
    %v2555 = vadd.f32 %v2554, %v2310
    %2556 = vst [vmem:[#allocation13] sm:$0xff] %v2555
    %v2557 = vpack.c.bf16 %v2512, %v2512
    %v2558 = vpack.c.bf16 %v2514, %v2514
    %v2559 = vpack.c.bf16 %v2516, %v2516
    %v2560 = vpack.c.bf16 %v2518, %v2518
    %v2561 = vpack.c.bf16 %v2520, %v2520
    %v2562 = vpack.c.bf16 %v2522, %v2522
    %v2563 = vpack.c.bf16 %v2524, %v2524
    %v2564 = vpack.c.bf16 %v2526, %v2526
    %v2573 = vunpack.c.l.b16 %v2557
    %v2574 = vunpack.c.l.b16 %v2558
    %v2575 = vunpack.c.l.b16 %v2559
    %v2576 = vunpack.c.l.b16 %v2560
    %v2577 = vunpack.c.l.b16 %v2561
    %v2578 = vunpack.c.l.b16 %v2562
    %v2579 = vunpack.c.l.b16 %v2563
    %v2580 = vunpack.c.l.b16 %v2564
    %v2581 = vpack.c.b16 %v2574, %v2573
    %v2582 = vpack.c.b16 %v2576, %v2575
    %v2583 = vpack.c.b16 %v2578, %v2577
    %v2584 = vpack.c.b16 %v2580, %v2579
    %2589 = vst [vmem:[#allocation14] sm:$0xff] %v2581
    %2590 = vst [vmem:[#allocation14 + $0x8] sm:$0xff] %v2582
    %2591 = vst [vmem:[#allocation14 + $0x10] sm:$0xff] %v2583
    %2592 = vst [vmem:[#allocation14 + $0x18] sm:$0xff] %v2584
    // Predicated region
    $region50: #{tpu_custom_call.1} parent=1 // pred_check
      _
    $region51: #{tpu_custom_call.1} parent=1 // pred_check_branch
      %2594 = sbr.rel (0) target = $region53
    $region52: #{tpu_custom_call.1} parent=1 // pred_region
      %s2596 = ssub.s32 128, 128
      %2597 = vsyncadd [#allocation4], %s2596
      %s2599 = sshll.u32 [#allocation13], 4
      %s2600 = int_to_ptr.vmem [resolvable:$true] %s2599
      %2602 = dma.vmem_to_hbm [thread:$0]  %s2600, 128, %s6, [#allocation4]
    $region53: #{tpu_custom_call.1} parent=1 // pred_fallthru
      _
    // Predicated region
    $region54: #{tpu_custom_call.1} parent=1 // pred_check
      _
    $region55: #{tpu_custom_call.1} parent=1 // pred_check_branch
      %2604 = sbr.rel (0) target = $region57
    $region56: #{tpu_custom_call.1} parent=1 // pred_region
      %s2606 = ssub.s32 512, 512
      %2607 = vsyncadd [#allocation15], %s2606
      %s2609 = sshll.u32 [#allocation14], 4
      %s2610 = int_to_ptr.vmem [resolvable:$true] %s2609
      %2612 = dma.vmem_to_hbm [thread:$0]  %s2610, 512, %s7, [#allocation15]
    $region57: #{tpu_custom_call.1} parent=1 // pred_fallthru
      _
    // Predicated region
    $region58: #{tpu_custom_call.1} parent=1 // pred_check
      _
    $region59: #{tpu_custom_call.1} parent=1 // pred_check_branch
      %2614 = sbr.rel (0) target = $region61
    $region60: #{tpu_custom_call.1} parent=1 // pred_region
      %2615 = dma.done [#allocation4], 128
    $region61: #{tpu_custom_call.1} parent=1 // pred_fallthru
      _
    // Predicated region
    $region62: #{tpu_custom_call.1} parent=1 // pred_check
      _
    $region63: #{tpu_custom_call.1} parent=1 // pred_check_branch
      %2617 = sbr.rel (0) target = $region65
    $region64: #{tpu_custom_call.1} parent=1 // pred_region
      %2618 = dma.done [#allocation15], 512
    $region65: #{tpu_custom_call.1} parent=1 // pred_fallthru
      _
    %2619 = vsyncpa [#allocation3], 1
    %2620 = vsyncpa [#allocation6], 1
    %2621 = vsyncpa [#allocation9], 1
    %2622 = vsyncpa [#allocation12], 1
    %2623 = vsyncpa [#allocation4], 1
    %2624 = vsyncpa [#allocation15], 1

</llo_original>
